<compile_context>
chip_gen: v5e
topology: v5e:2x2
jax: 0.10.0
libtpu: 0.0.40
codegen_flags: <defaults>
</compile_context>

<pallas_src>
import numpy as np
import jax
import jax.numpy as jnp
from jax.experimental import pallas as pl
from jax.experimental.pallas import tpu as pltpu

K_SIZE, STRIDE, PAD = 4, 2, 1
BN_EPS = 1e-5
LEAKY = 0.2


def _make_encoder_kernel(spatials):
    """Builds the fused kernel; `spatials` = static tuple of Ho*Wo per layer."""
    n_layers = len(spatials)

    def kernel(*refs):
        x_ref = refs[0]
        o_ref = refs[-1]
        layer_refs = refs[1:-1]
        h = x_ref[...]                                   # (N, Cin*H*W) f32, stays in VMEM
        for l in range(n_layers):
            t_ref, bias_ref, gb_ref, bt_ref = layer_refs[4 * l:4 * l + 4]
            p_sp = spatials[l]                           # Ho*Wo (python int)
            cols = t_ref.shape[1]                        # Cout*P
            cout = bt_ref.shape[0]

            # Conv2d as a single Toeplitz GEMM (+ bias).  T stored bf16 (halves
            # the dominant weight DMA), contracted / accumulated in f32.
            y = jnp.dot(h, t_ref[...].astype(jnp.float32),
                        preferred_element_type=jnp.float32)
            y = y + bias_ref[...]

            # LeakyReLU(0.2): one VPU max instead of compare+select.
            y = jnp.maximum(y, LEAKY * y)

            # BatchNorm2d, training-mode batch stats per channel over (N, Ho, Wo).
            # One-pass moments: stack [sum(y), sum(y*y)] and reduce per channel
            # with a single transposed dot against Bt (no separate B matrix).
            inv_count = 1.0 / float(y.shape[0] * p_sp)
            sum_row = jnp.sum(y, axis=0, keepdims=True)          # (1, Cout*P)
            sumsq_row = jnp.sum(y * y, axis=0, keepdims=True)    # (1, Cout*P)
            ridx = jax.lax.broadcasted_iota(jnp.int32, (2, cols), 0)
            rows = jnp.where(ridx == 0, sum_row, sumsq_row)      # (2, Cout*P)
            moments = jax.lax.dot_general(                       # rows @ Bt.T
                rows, bt_ref[...], (((1,), (1,)), ((), ())),
                preferred_element_type=jnp.float32) * inv_count  # (2, Cout)
            mean_c = moments[0:1, :]
            var_c = moments[1:2, :] - mean_c * mean_c            # biased var
            inv_c = jax.lax.rsqrt(var_c + BN_EPS)
            scale_c = gb_ref[0:1, :] * inv_c                     # gamma * rsqrt
            shift_c = gb_ref[1:2, :] - mean_c * scale_c          # beta - mean*scale
            sidx = jax.lax.broadcasted_iota(jnp.int32, (2, cout), 0)
            ss = jnp.where(sidx == 0, scale_c, shift_c)          # (2, Cout)
            ss_e = jnp.dot(ss, bt_ref[...],
                           preferred_element_type=jnp.float32)   # (2, Cout*P)
            h = y * ss_e[0:1, :] + ss_e[1:2, :]
        o_ref[...] = h.astype(o_ref.dtype)

    return kernel


def encoder_forward(x_nchw, packed):
    """packed = (spatials, [T, bias_e, gb, Bt] * n_layers).  Returns (N, Cout_last*Ho*Wo)."""
    spatials, arrays = packed
    N = x_nchw.shape[0]
    x2d = x_nchw.reshape(N, -1).astype(jnp.float32)   # NCHW flatten == channel-major rows
    out_cols = arrays[-4].shape[1]                    # last layer's T: (Kin, Cout*Ho*Wo)
    inputs = [x2d] + list(arrays)

    # Explicit VMEM budget sized to the actual (small) footprint, with headroom.
    footprint = sum(int(np.prod(a.shape)) * jnp.dtype(a.dtype).itemsize for a in inputs)
    footprint += N * out_cols * 4
    vmem_limit = int(min(100 * 1024 * 1024, max(4 * footprint, 8 * 1024 * 1024)))

    # No grid: single invocation, whole arrays resident in VMEM (no pointless
    # double-buffering of the constant Toeplitz operands).
    return pl.pallas_call(
        _make_encoder_kernel(spatials),
        out_shape=jax.ShapeDtypeStruct((N, out_cols), jnp.float32),
        compiler_params=pltpu.CompilerParams(vmem_limit_bytes=vmem_limit),
    )(*inputs)


def _conv_to_toeplitz(w, H, W):
    """Dense Toeplitz matrix for Conv2d(k=4, s=2, p=1).
    Rows indexed (ci, h, w) channel-major; cols indexed (co, ho, wo) channel-major."""
    Cout, Cin, k, _ = w.shape
    Ho = (H + 2 * PAD - k) // STRIDE + 1
    Wo = (W + 2 * PAD - k) // STRIDE + 1
    T = np.zeros((Cin, H, W, Cout, Ho, Wo), np.float32)
    for kh in range(k):
        for kw in range(k):
            wk = np.asarray(w[:, :, kh, kw]).T            # (Cin, Cout)
            for ho in range(Ho):
                hi = STRIDE * ho - PAD + kh
                if hi < 0 or hi >= H:
                    continue
                for wo in range(Wo):
                    wi = STRIDE * wo - PAD + kw
                    if wi < 0 or wi >= W:
                        continue
                    T[:, hi, wi, :, ho, wo] = wk
    return T.reshape(Cin * H * W, Cout * Ho * Wo), Ho, Wo


def init_params(key, nc, nef):
    """PyTorch-default-style init (uniform +-1/sqrt(fan_in); BN gamma=1, beta=0)."""
    chans = [(nc, nef), (nef, nef * 2), (nef * 2, nef * 4), (nef * 4, nef * 8)]
    params = []
    for cin, cout in chans:
        key, k1, k2 = jax.random.split(key, 3)
        fan_in = cin * K_SIZE * K_SIZE
        bound = 1.0 / float(fan_in) ** 0.5
        w = jax.random.uniform(k1, (cout, cin, K_SIZE, K_SIZE), jnp.float32, -bound, bound)
        b = jax.random.uniform(k2, (cout,), jnp.float32, -bound, bound)
        g = jnp.ones((cout,), jnp.float32)
        beta = jnp.zeros((cout,), jnp.float32)
        params.append((w, b, g, beta))
    return params


def pack_encoder(params, isize):
    """Host-side (one-time) precompute: bf16 Toeplitz GEMM operands, expanded
    conv bias, per-channel (gamma, beta), and per-channel expansion matrix Bt."""
    if isize > 16:
        # TODO(synk): for isize>=32 switch to a K-tiled accumulated im2col GEMM
        # path (grid over K + VMEM accumulator); dense Toeplitz T's exceed
        # v7x's 64 MiB VMEM at isize>=32 and every generation at isize>=64.
        raise NotImplementedError("dense-Toeplitz fused path is sized for isize<=16")
    spatials, arrays = [], []
    H = W = isize
    for (w, b, g, beta) in params:
        T, Ho, Wo = _conv_to_toeplitz(np.asarray(w), H, W)
        cout = w.shape[0]
        P = Ho * Wo
        bias_e = np.repeat(np.asarray(b), P)[None, :].astype(np.float32)          # (1, cout*P)
        gb = np.stack([np.asarray(g), np.asarray(beta)], axis=0).astype(np.float32)  # (2, cout)
        Bt = np.kron(np.eye(cout, dtype=np.float32),
                     np.ones((1, P), np.float32))                                  # (cout, cout*P)
        arrays += [jnp.asarray(T, dtype=jnp.bfloat16),   # weight-only bf16 storage
                   jnp.asarray(bias_e),
                   jnp.asarray(gb),
                   jnp.asarray(Bt)]
        spatials.append(P)
        H, W = Ho, Wo
    return tuple(spatials), arrays
    # TODO(synk): BatchNorm running-mean/var buffer updates are not part of the
    # forward output and are not materialized here (training-mode batch stats only).


if __name__ == "__main__":
    # Encoder(nc=3, nef=8, nz=..., isize=16, device=...); nz only affects later modules.
    nc, nef, isize, batch = 3, 8, 16, 2
    key = jax.random.PRNGKey(0)
    key_x, key_p = jax.random.split(key)
    x = jax.random.normal(key_x, (batch, nc, isize, isize), jnp.float32)
    params = init_params(key_p, nc, nef)
    packed = pack_encoder(params, isize)

    fwd = jax.jit(lambda xx: encoder_forward(xx, packed))
    hidden = fwd(x)
    jax.block_until_ready(hidden)
    assert hidden.shape == (batch, nef * 8 * (isize // 16) * (isize // 16)), hidden.shape
    print("KERNEL_OK")
</pallas_src>

<mosaic_0001>
module attributes {stable_mosaic.version = 11 : i64} {
  func.func @kernel(%arg0: memref<2x768xf32, #tpu.memory_space<vmem>>, %arg1: memref<768x512xbf16, #tpu.memory_space<vmem>>, %arg2: memref<1x512xf32, #tpu.memory_space<vmem>>, %arg3: memref<2x8xf32, #tpu.memory_space<vmem>>, %arg4: memref<8x512xf32, #tpu.memory_space<vmem>>, %arg5: memref<512x256xbf16, #tpu.memory_space<vmem>>, %arg6: memref<1x256xf32, #tpu.memory_space<vmem>>, %arg7: memref<2x16xf32, #tpu.memory_space<vmem>>, %arg8: memref<16x256xf32, #tpu.memory_space<vmem>>, %arg9: memref<256x128xbf16, #tpu.memory_space<vmem>>, %arg10: memref<1x128xf32, #tpu.memory_space<vmem>>, %arg11: memref<2x32xf32, #tpu.memory_space<vmem>>, %arg12: memref<32x128xf32, #tpu.memory_space<vmem>>, %arg13: memref<128x64xbf16, #tpu.memory_space<vmem>>, %arg14: memref<1x64xf32, #tpu.memory_space<vmem>>, %arg15: memref<2x64xf32, #tpu.memory_space<vmem>>, %arg16: memref<64x64xf32, #tpu.memory_space<vmem>>, %arg17: memref<2x64xf32, #tpu.memory_space<vmem>>) attributes {dimension_semantics = [], scalar_prefetch = 0 : i64, scratch_operands = 0 : i64, tpu.core_type = #tpu.core_type<tc>} {
    %c0 = arith.constant 0 : index
    %c0_0 = arith.constant 0 : index
    %0 = vector.load %arg0[%c0, %c0_0] : memref<2x768xf32, #tpu.memory_space<vmem>>, vector<2x768xf32>
    %c0_1 = arith.constant 0 : index
    %c0_2 = arith.constant 0 : index
    %1 = vector.load %arg1[%c0_1, %c0_2] : memref<768x512xbf16, #tpu.memory_space<vmem>>, vector<768x512xbf16>
    %2 = arith.extf %1 : vector<768x512xbf16> to vector<768x512xf32>
    %cst = arith.constant dense<0.000000e+00> : vector<2x512xf32>
    %3 = tpu.matmul %0, %2, %cst {dimension_numbers = #tpu.dot_dimension_numbers<[1], [0], [0], [1], [0, 0, 1, 1], [], []>} : vector<2x768xf32>, vector<768x512xf32>, vector<2x512xf32> -> vector<2x512xf32>
    %c0_3 = arith.constant 0 : index
    %c0_4 = arith.constant 0 : index
    %4 = vector.load %arg2[%c0_3, %c0_4] : memref<1x512xf32, #tpu.memory_space<vmem>>, vector<1x512xf32>
    %5 = vector.broadcast %4 : vector<1x512xf32> to vector<2x512xf32>
    %6 = arith.addf %3, %5 : vector<2x512xf32>
    %cst_5 = arith.constant 2.000000e-01 : f32
    %7 = vector.broadcast %cst_5 : f32 to vector<2x512xf32>
    %8 = arith.mulf %7, %6 : vector<2x512xf32>
    %9 = arith.maximumf %6, %8 : vector<2x512xf32>
    %cst_6 = arith.constant dense<0.000000e+00> : vector<512xf32>
    %10 = vector.multi_reduction <add>, %9, %cst_6 [0] : vector<2x512xf32> to vector<512xf32>
    %11 = vector.shape_cast %10 : vector<512xf32> to vector<1x512xf32>
    %12 = arith.mulf %9, %9 : vector<2x512xf32>
    %cst_7 = arith.constant dense<0.000000e+00> : vector<512xf32>
    %13 = vector.multi_reduction <add>, %12, %cst_7 [0] : vector<2x512xf32> to vector<512xf32>
    %14 = vector.shape_cast %13 : vector<512xf32> to vector<1x512xf32>
    %15 = tpu.iota {dimensions = array<i32: 0>} : vector<2x512xi32>
    %c0_i32 = arith.constant 0 : i32
    %16 = vector.broadcast %c0_i32 : i32 to vector<2x512xi32>
    %17 = arith.cmpi eq, %15, %16 : vector<2x512xi32>
    %18 = vector.shape_cast %11 : vector<1x512xf32> to vector<1x512xf32>
    %19 = vector.broadcast %18 : vector<1x512xf32> to vector<2x512xf32>
    %20 = vector.shape_cast %14 : vector<1x512xf32> to vector<1x512xf32>
    %21 = vector.broadcast %20 : vector<1x512xf32> to vector<2x512xf32>
    %22 = arith.select %17, %19, %21 : vector<2x512xi1>, vector<2x512xf32>
    %c0_8 = arith.constant 0 : index
    %c0_9 = arith.constant 0 : index
    %23 = vector.load %arg4[%c0_8, %c0_9] : memref<8x512xf32, #tpu.memory_space<vmem>>, vector<8x512xf32>
    %cst_10 = arith.constant dense<0.000000e+00> : vector<2x8xf32>
    %24 = tpu.matmul %22, %23, %cst_10 {dimension_numbers = #tpu.dot_dimension_numbers<[1], [1], [0], [0], [0, 0, 1, 0], [], []>} : vector<2x512xf32>, vector<8x512xf32>, vector<2x8xf32> -> vector<2x8xf32>
    %cst_11 = arith.constant 7.812500e-03 : f32
    %25 = vector.broadcast %cst_11 : f32 to vector<2x8xf32>
    %26 = arith.mulf %24, %25 : vector<2x8xf32>
    %27 = vector.extract_strided_slice %26 {offsets = [0, 0], sizes = [1, 8], strides = [1, 1]} : vector<2x8xf32> to vector<1x8xf32>
    %28 = vector.extract_strided_slice %26 {offsets = [1, 0], sizes = [1, 8], strides = [1, 1]} : vector<2x8xf32> to vector<1x8xf32>
    %29 = arith.mulf %27, %27 : vector<1x8xf32>
    %30 = arith.subf %28, %29 : vector<1x8xf32>
    %cst_12 = arith.constant 9.99999974E-6 : f32
    %31 = vector.broadcast %cst_12 : f32 to vector<1x8xf32>
    %32 = arith.addf %30, %31 : vector<1x8xf32>
    %33 = math.rsqrt %32 : vector<1x8xf32>
    %c0_13 = arith.constant 0 : index
    %c0_14 = arith.constant 0 : index
    %34 = vector.load %arg3[%c0_13, %c0_14] : memref<2x8xf32, #tpu.memory_space<vmem>>, vector<1x8xf32>
    %35 = arith.mulf %34, %33 : vector<1x8xf32>
    %c1 = arith.constant 1 : index
    %c0_15 = arith.constant 0 : index
    %36 = vector.load %arg3[%c1, %c0_15] : memref<2x8xf32, #tpu.memory_space<vmem>>, vector<1x8xf32>
    %37 = arith.mulf %27, %35 : vector<1x8xf32>
    %38 = arith.subf %36, %37 : vector<1x8xf32>
    %39 = tpu.iota {dimensions = array<i32: 0>} : vector<2x8xi32>
    %c0_i32_16 = arith.constant 0 : i32
    %40 = vector.broadcast %c0_i32_16 : i32 to vector<2x8xi32>
    %41 = arith.cmpi eq, %39, %40 : vector<2x8xi32>
    %42 = vector.shape_cast %35 : vector<1x8xf32> to vector<1x8xf32>
    %43 = vector.broadcast %42 : vector<1x8xf32> to vector<2x8xf32>
    %44 = vector.shape_cast %38 : vector<1x8xf32> to vector<1x8xf32>
    %45 = vector.broadcast %44 : vector<1x8xf32> to vector<2x8xf32>
    %46 = arith.select %41, %43, %45 : vector<2x8xi1>, vector<2x8xf32>
    %c0_17 = arith.constant 0 : index
    %c0_18 = arith.constant 0 : index
    %47 = vector.load %arg4[%c0_17, %c0_18] : memref<8x512xf32, #tpu.memory_space<vmem>>, vector<8x512xf32>
    %cst_19 = arith.constant dense<0.000000e+00> : vector<2x512xf32>
    %48 = tpu.matmul %46, %47, %cst_19 {dimension_numbers = #tpu.dot_dimension_numbers<[1], [0], [0], [1], [0, 0, 1, 1], [], []>} : vector<2x8xf32>, vector<8x512xf32>, vector<2x512xf32> -> vector<2x512xf32>
    %49 = vector.extract_strided_slice %48 {offsets = [0, 0], sizes = [1, 512], strides = [1, 1]} : vector<2x512xf32> to vector<1x512xf32>
    %50 = vector.broadcast %49 : vector<1x512xf32> to vector<2x512xf32>
    %51 = arith.mulf %9, %50 : vector<2x512xf32>
    %52 = vector.extract_strided_slice %48 {offsets = [1, 0], sizes = [1, 512], strides = [1, 1]} : vector<2x512xf32> to vector<1x512xf32>
    %53 = vector.broadcast %52 : vector<1x512xf32> to vector<2x512xf32>
    %54 = arith.addf %51, %53 : vector<2x512xf32>
    %c0_20 = arith.constant 0 : index
    %c0_21 = arith.constant 0 : index
    %55 = vector.load %arg5[%c0_20, %c0_21] : memref<512x256xbf16, #tpu.memory_space<vmem>>, vector<512x256xbf16>
    %56 = arith.extf %55 : vector<512x256xbf16> to vector<512x256xf32>
    %cst_22 = arith.constant dense<0.000000e+00> : vector<2x256xf32>
    %57 = tpu.matmul %54, %56, %cst_22 {dimension_numbers = #tpu.dot_dimension_numbers<[1], [0], [0], [1], [0, 0, 1, 1], [], []>} : vector<2x512xf32>, vector<512x256xf32>, vector<2x256xf32> -> vector<2x256xf32>
    %c0_23 = arith.constant 0 : index
    %c0_24 = arith.constant 0 : index
    %58 = vector.load %arg6[%c0_23, %c0_24] : memref<1x256xf32, #tpu.memory_space<vmem>>, vector<1x256xf32>
    %59 = vector.broadcast %58 : vector<1x256xf32> to vector<2x256xf32>
    %60 = arith.addf %57, %59 : vector<2x256xf32>
    %cst_25 = arith.constant 2.000000e-01 : f32
    %61 = vector.broadcast %cst_25 : f32 to vector<2x256xf32>
    %62 = arith.mulf %61, %60 : vector<2x256xf32>
    %63 = arith.maximumf %60, %62 : vector<2x256xf32>
    %cst_26 = arith.constant dense<0.000000e+00> : vector<256xf32>
    %64 = vector.multi_reduction <add>, %63, %cst_26 [0] : vector<2x256xf32> to vector<256xf32>
    %65 = vector.shape_cast %64 : vector<256xf32> to vector<1x256xf32>
    %66 = arith.mulf %63, %63 : vector<2x256xf32>
    %cst_27 = arith.constant dense<0.000000e+00> : vector<256xf32>
    %67 = vector.multi_reduction <add>, %66, %cst_27 [0] : vector<2x256xf32> to vector<256xf32>
    %68 = vector.shape_cast %67 : vector<256xf32> to vector<1x256xf32>
    %69 = tpu.iota {dimensions = array<i32: 0>} : vector<2x256xi32>
    %c0_i32_28 = arith.constant 0 : i32
    %70 = vector.broadcast %c0_i32_28 : i32 to vector<2x256xi32>
    %71 = arith.cmpi eq, %69, %70 : vector<2x256xi32>
    %72 = vector.shape_cast %65 : vector<1x256xf32> to vector<1x256xf32>
    %73 = vector.broadcast %72 : vector<1x256xf32> to vector<2x256xf32>
    %74 = vector.shape_cast %68 : vector<1x256xf32> to vector<1x256xf32>
    %75 = vector.broadcast %74 : vector<1x256xf32> to vector<2x256xf32>
    %76 = arith.select %71, %73, %75 : vector<2x256xi1>, vector<2x256xf32>
    %c0_29 = arith.constant 0 : index
    %c0_30 = arith.constant 0 : index
    %77 = vector.load %arg8[%c0_29, %c0_30] : memref<16x256xf32, #tpu.memory_space<vmem>>, vector<16x256xf32>
    %cst_31 = arith.constant dense<0.000000e+00> : vector<2x16xf32>
    %78 = tpu.matmul %76, %77, %cst_31 {dimension_numbers = #tpu.dot_dimension_numbers<[1], [1], [0], [0], [0, 0, 1, 0], [], []>} : vector<2x256xf32>, vector<16x256xf32>, vector<2x16xf32> -> vector<2x16xf32>
    %cst_32 = arith.constant 3.125000e-02 : f32
    %79 = vector.broadcast %cst_32 : f32 to vector<2x16xf32>
    %80 = arith.mulf %78, %79 : vector<2x16xf32>
    %81 = vector.extract_strided_slice %80 {offsets = [0, 0], sizes = [1, 16], strides = [1, 1]} : vector<2x16xf32> to vector<1x16xf32>
    %82 = vector.extract_strided_slice %80 {offsets = [1, 0], sizes = [1, 16], strides = [1, 1]} : vector<2x16xf32> to vector<1x16xf32>
    %83 = arith.mulf %81, %81 : vector<1x16xf32>
    %84 = arith.subf %82, %83 : vector<1x16xf32>
    %cst_33 = arith.constant 9.99999974E-6 : f32
    %85 = vector.broadcast %cst_33 : f32 to vector<1x16xf32>
    %86 = arith.addf %84, %85 : vector<1x16xf32>
    %87 = math.rsqrt %86 : vector<1x16xf32>
    %c0_34 = arith.constant 0 : index
    %c0_35 = arith.constant 0 : index
    %88 = vector.load %arg7[%c0_34, %c0_35] : memref<2x16xf32, #tpu.memory_space<vmem>>, vector<1x16xf32>
    %89 = arith.mulf %88, %87 : vector<1x16xf32>
    %c1_36 = arith.constant 1 : index
    %c0_37 = arith.constant 0 : index
    %90 = vector.load %arg7[%c1_36, %c0_37] : memref<2x16xf32, #tpu.memory_space<vmem>>, vector<1x16xf32>
    %91 = arith.mulf %81, %89 : vector<1x16xf32>
    %92 = arith.subf %90, %91 : vector<1x16xf32>
    %93 = tpu.iota {dimensions = array<i32: 0>} : vector<2x16xi32>
    %c0_i32_38 = arith.constant 0 : i32
    %94 = vector.broadcast %c0_i32_38 : i32 to vector<2x16xi32>
    %95 = arith.cmpi eq, %93, %94 : vector<2x16xi32>
    %96 = vector.shape_cast %89 : vector<1x16xf32> to vector<1x16xf32>
    %97 = vector.broadcast %96 : vector<1x16xf32> to vector<2x16xf32>
    %98 = vector.shape_cast %92 : vector<1x16xf32> to vector<1x16xf32>
    %99 = vector.broadcast %98 : vector<1x16xf32> to vector<2x16xf32>
    %100 = arith.select %95, %97, %99 : vector<2x16xi1>, vector<2x16xf32>
    %c0_39 = arith.constant 0 : index
    %c0_40 = arith.constant 0 : index
    %101 = vector.load %arg8[%c0_39, %c0_40] : memref<16x256xf32, #tpu.memory_space<vmem>>, vector<16x256xf32>
    %cst_41 = arith.constant dense<0.000000e+00> : vector<2x256xf32>
    %102 = tpu.matmul %100, %101, %cst_41 {dimension_numbers = #tpu.dot_dimension_numbers<[1], [0], [0], [1], [0, 0, 1, 1], [], []>} : vector<2x16xf32>, vector<16x256xf32>, vector<2x256xf32> -> vector<2x256xf32>
    %103 = vector.extract_strided_slice %102 {offsets = [0, 0], sizes = [1, 256], strides = [1, 1]} : vector<2x256xf32> to vector<1x256xf32>
    %104 = vector.broadcast %103 : vector<1x256xf32> to vector<2x256xf32>
    %105 = arith.mulf %63, %104 : vector<2x256xf32>
    %106 = vector.extract_strided_slice %102 {offsets = [1, 0], sizes = [1, 256], strides = [1, 1]} : vector<2x256xf32> to vector<1x256xf32>
    %107 = vector.broadcast %106 : vector<1x256xf32> to vector<2x256xf32>
    %108 = arith.addf %105, %107 : vector<2x256xf32>
    %c0_42 = arith.constant 0 : index
    %c0_43 = arith.constant 0 : index
    %109 = vector.load %arg9[%c0_42, %c0_43] : memref<256x128xbf16, #tpu.memory_space<vmem>>, vector<256x128xbf16>
    %110 = arith.extf %109 : vector<256x128xbf16> to vector<256x128xf32>
    %cst_44 = arith.constant dense<0.000000e+00> : vector<2x128xf32>
    %111 = tpu.matmul %108, %110, %cst_44 {dimension_numbers = #tpu.dot_dimension_numbers<[1], [0], [0], [1], [0, 0, 1, 1], [], []>} : vector<2x256xf32>, vector<256x128xf32>, vector<2x128xf32> -> vector<2x128xf32>
    %c0_45 = arith.constant 0 : index
    %c0_46 = arith.constant 0 : index
    %112 = vector.load %arg10[%c0_45, %c0_46] : memref<1x128xf32, #tpu.memory_space<vmem>>, vector<1x128xf32>
    %113 = vector.broadcast %112 : vector<1x128xf32> to vector<2x128xf32>
    %114 = arith.addf %111, %113 : vector<2x128xf32>
    %cst_47 = arith.constant 2.000000e-01 : f32
    %115 = vector.broadcast %cst_47 : f32 to vector<2x128xf32>
    %116 = arith.mulf %115, %114 : vector<2x128xf32>
    %117 = arith.maximumf %114, %116 : vector<2x128xf32>
    %cst_48 = arith.constant dense<0.000000e+00> : vector<128xf32>
    %118 = vector.multi_reduction <add>, %117, %cst_48 [0] : vector<2x128xf32> to vector<128xf32>
    %119 = vector.shape_cast %118 : vector<128xf32> to vector<1x128xf32>
    %120 = arith.mulf %117, %117 : vector<2x128xf32>
    %cst_49 = arith.constant dense<0.000000e+00> : vector<128xf32>
    %121 = vector.multi_reduction <add>, %120, %cst_49 [0] : vector<2x128xf32> to vector<128xf32>
    %122 = vector.shape_cast %121 : vector<128xf32> to vector<1x128xf32>
    %123 = tpu.iota {dimensions = array<i32: 0>} : vector<2x128xi32>
    %c0_i32_50 = arith.constant 0 : i32
    %124 = vector.broadcast %c0_i32_50 : i32 to vector<2x128xi32>
    %125 = arith.cmpi eq, %123, %124 : vector<2x128xi32>
    %126 = vector.shape_cast %119 : vector<1x128xf32> to vector<1x128xf32>
    %127 = vector.broadcast %126 : vector<1x128xf32> to vector<2x128xf32>
    %128 = vector.shape_cast %122 : vector<1x128xf32> to vector<1x128xf32>
    %129 = vector.broadcast %128 : vector<1x128xf32> to vector<2x128xf32>
    %130 = arith.select %125, %127, %129 : vector<2x128xi1>, vector<2x128xf32>
    %c0_51 = arith.constant 0 : index
    %c0_52 = arith.constant 0 : index
    %131 = vector.load %arg12[%c0_51, %c0_52] : memref<32x128xf32, #tpu.memory_space<vmem>>, vector<32x128xf32>
    %cst_53 = arith.constant dense<0.000000e+00> : vector<2x32xf32>
    %132 = tpu.matmul %130, %131, %cst_53 {dimension_numbers = #tpu.dot_dimension_numbers<[1], [1], [0], [0], [0, 0, 1, 0], [], []>} : vector<2x128xf32>, vector<32x128xf32>, vector<2x32xf32> -> vector<2x32xf32>
    %cst_54 = arith.constant 1.250000e-01 : f32
    %133 = vector.broadcast %cst_54 : f32 to vector<2x32xf32>
    %134 = arith.mulf %132, %133 : vector<2x32xf32>
    %135 = vector.extract_strided_slice %134 {offsets = [0, 0], sizes = [1, 32], strides = [1, 1]} : vector<2x32xf32> to vector<1x32xf32>
    %136 = vector.extract_strided_slice %134 {offsets = [1, 0], sizes = [1, 32], strides = [1, 1]} : vector<2x32xf32> to vector<1x32xf32>
    %137 = arith.mulf %135, %135 : vector<1x32xf32>
    %138 = arith.subf %136, %137 : vector<1x32xf32>
    %cst_55 = arith.constant 9.99999974E-6 : f32
    %139 = vector.broadcast %cst_55 : f32 to vector<1x32xf32>
    %140 = arith.addf %138, %139 : vector<1x32xf32>
    %141 = math.rsqrt %140 : vector<1x32xf32>
    %c0_56 = arith.constant 0 : index
    %c0_57 = arith.constant 0 : index
    %142 = vector.load %arg11[%c0_56, %c0_57] : memref<2x32xf32, #tpu.memory_space<vmem>>, vector<1x32xf32>
    %143 = arith.mulf %142, %141 : vector<1x32xf32>
    %c1_58 = arith.constant 1 : index
    %c0_59 = arith.constant 0 : index
    %144 = vector.load %arg11[%c1_58, %c0_59] : memref<2x32xf32, #tpu.memory_space<vmem>>, vector<1x32xf32>
    %145 = arith.mulf %135, %143 : vector<1x32xf32>
    %146 = arith.subf %144, %145 : vector<1x32xf32>
    %147 = tpu.iota {dimensions = array<i32: 0>} : vector<2x32xi32>
    %c0_i32_60 = arith.constant 0 : i32
    %148 = vector.broadcast %c0_i32_60 : i32 to vector<2x32xi32>
    %149 = arith.cmpi eq, %147, %148 : vector<2x32xi32>
    %150 = vector.shape_cast %143 : vector<1x32xf32> to vector<1x32xf32>
    %151 = vector.broadcast %150 : vector<1x32xf32> to vector<2x32xf32>
    %152 = vector.shape_cast %146 : vector<1x32xf32> to vector<1x32xf32>
    %153 = vector.broadcast %152 : vector<1x32xf32> to vector<2x32xf32>
    %154 = arith.select %149, %151, %153 : vector<2x32xi1>, vector<2x32xf32>
    %c0_61 = arith.constant 0 : index
    %c0_62 = arith.constant 0 : index
    %155 = vector.load %arg12[%c0_61, %c0_62] : memref<32x128xf32, #tpu.memory_space<vmem>>, vector<32x128xf32>
    %cst_63 = arith.constant dense<0.000000e+00> : vector<2x128xf32>
    %156 = tpu.matmul %154, %155, %cst_63 {dimension_numbers = #tpu.dot_dimension_numbers<[1], [0], [0], [1], [0, 0, 1, 1], [], []>} : vector<2x32xf32>, vector<32x128xf32>, vector<2x128xf32> -> vector<2x128xf32>
    %157 = vector.extract_strided_slice %156 {offsets = [0, 0], sizes = [1, 128], strides = [1, 1]} : vector<2x128xf32> to vector<1x128xf32>
    %158 = vector.broadcast %157 : vector<1x128xf32> to vector<2x128xf32>
    %159 = arith.mulf %117, %158 : vector<2x128xf32>
    %160 = vector.extract_strided_slice %156 {offsets = [1, 0], sizes = [1, 128], strides = [1, 1]} : vector<2x128xf32> to vector<1x128xf32>
    %161 = vector.broadcast %160 : vector<1x128xf32> to vector<2x128xf32>
    %162 = arith.addf %159, %161 : vector<2x128xf32>
    %c0_64 = arith.constant 0 : index
    %c0_65 = arith.constant 0 : index
    %163 = vector.load %arg13[%c0_64, %c0_65] : memref<128x64xbf16, #tpu.memory_space<vmem>>, vector<128x64xbf16>
    %164 = arith.extf %163 : vector<128x64xbf16> to vector<128x64xf32>
    %cst_66 = arith.constant dense<0.000000e+00> : vector<2x64xf32>
    %165 = tpu.matmul %162, %164, %cst_66 {dimension_numbers = #tpu.dot_dimension_numbers<[1], [0], [0], [1], [0, 0, 1, 1], [], []>} : vector<2x128xf32>, vector<128x64xf32>, vector<2x64xf32> -> vector<2x64xf32>
    %c0_67 = arith.constant 0 : index
    %c0_68 = arith.constant 0 : index
    %166 = vector.load %arg14[%c0_67, %c0_68] : memref<1x64xf32, #tpu.memory_space<vmem>>, vector<1x64xf32>
    %167 = vector.broadcast %166 : vector<1x64xf32> to vector<2x64xf32>
    %168 = arith.addf %165, %167 : vector<2x64xf32>
    %cst_69 = arith.constant 2.000000e-01 : f32
    %169 = vector.broadcast %cst_69 : f32 to vector<2x64xf32>
    %170 = arith.mulf %169, %168 : vector<2x64xf32>
    %171 = arith.maximumf %168, %170 : vector<2x64xf32>
    %cst_70 = arith.constant dense<0.000000e+00> : vector<64xf32>
    %172 = vector.multi_reduction <add>, %171, %cst_70 [0] : vector<2x64xf32> to vector<64xf32>
    %173 = vector.shape_cast %172 : vector<64xf32> to vector<1x64xf32>
    %174 = arith.mulf %171, %171 : vector<2x64xf32>
    %cst_71 = arith.constant dense<0.000000e+00> : vector<64xf32>
    %175 = vector.multi_reduction <add>, %174, %cst_71 [0] : vector<2x64xf32> to vector<64xf32>
    %176 = vector.shape_cast %175 : vector<64xf32> to vector<1x64xf32>
    %177 = tpu.iota {dimensions = array<i32: 0>} : vector<2x64xi32>
    %c0_i32_72 = arith.constant 0 : i32
    %178 = vector.broadcast %c0_i32_72 : i32 to vector<2x64xi32>
    %179 = arith.cmpi eq, %177, %178 : vector<2x64xi32>
    %180 = vector.shape_cast %173 : vector<1x64xf32> to vector<1x64xf32>
    %181 = vector.broadcast %180 : vector<1x64xf32> to vector<2x64xf32>
    %182 = vector.shape_cast %176 : vector<1x64xf32> to vector<1x64xf32>
    %183 = vector.broadcast %182 : vector<1x64xf32> to vector<2x64xf32>
    %184 = arith.select %179, %181, %183 : vector<2x64xi1>, vector<2x64xf32>
    %c0_73 = arith.constant 0 : index
    %c0_74 = arith.constant 0 : index
    %185 = vector.load %arg16[%c0_73, %c0_74] : memref<64x64xf32, #tpu.memory_space<vmem>>, vector<64x64xf32>
    %cst_75 = arith.constant dense<0.000000e+00> : vector<2x64xf32>
    %186 = tpu.matmul %184, %185, %cst_75 {dimension_numbers = #tpu.dot_dimension_numbers<[1], [1], [0], [0], [0, 0, 1, 0], [], []>} : vector<2x64xf32>, vector<64x64xf32>, vector<2x64xf32> -> vector<2x64xf32>
    %cst_76 = arith.constant 5.000000e-01 : f32
    %187 = vector.broadcast %cst_76 : f32 to vector<2x64xf32>
    %188 = arith.mulf %186, %187 : vector<2x64xf32>
    %189 = vector.extract_strided_slice %188 {offsets = [0, 0], sizes = [1, 64], strides = [1, 1]} : vector<2x64xf32> to vector<1x64xf32>
    %190 = vector.extract_strided_slice %188 {offsets = [1, 0], sizes = [1, 64], strides = [1, 1]} : vector<2x64xf32> to vector<1x64xf32>
    %191 = arith.mulf %189, %189 : vector<1x64xf32>
    %192 = arith.subf %190, %191 : vector<1x64xf32>
    %cst_77 = arith.constant 9.99999974E-6 : f32
    %193 = vector.broadcast %cst_77 : f32 to vector<1x64xf32>
    %194 = arith.addf %192, %193 : vector<1x64xf32>
    %195 = math.rsqrt %194 : vector<1x64xf32>
    %c0_78 = arith.constant 0 : index
    %c0_79 = arith.constant 0 : index
    %196 = vector.load %arg15[%c0_78, %c0_79] : memref<2x64xf32, #tpu.memory_space<vmem>>, vector<1x64xf32>
    %197 = arith.mulf %196, %195 : vector<1x64xf32>
    %c1_80 = arith.constant 1 : index
    %c0_81 = arith.constant 0 : index
    %198 = vector.load %arg15[%c1_80, %c0_81] : memref<2x64xf32, #tpu.memory_space<vmem>>, vector<1x64xf32>
    %199 = arith.mulf %189, %197 : vector<1x64xf32>
    %200 = arith.subf %198, %199 : vector<1x64xf32>
    %201 = tpu.iota {dimensions = array<i32: 0>} : vector<2x64xi32>
    %c0_i32_82 = arith.constant 0 : i32
    %202 = vector.broadcast %c0_i32_82 : i32 to vector<2x64xi32>
    %203 = arith.cmpi eq, %201, %202 : vector<2x64xi32>
    %204 = vector.shape_cast %197 : vector<1x64xf32> to vector<1x64xf32>
    %205 = vector.broadcast %204 : vector<1x64xf32> to vector<2x64xf32>
    %206 = vector.shape_cast %200 : vector<1x64xf32> to vector<1x64xf32>
    %207 = vector.broadcast %206 : vector<1x64xf32> to vector<2x64xf32>
    %208 = arith.select %203, %205, %207 : vector<2x64xi1>, vector<2x64xf32>
    %c0_83 = arith.constant 0 : index
    %c0_84 = arith.constant 0 : index
    %209 = vector.load %arg16[%c0_83, %c0_84] : memref<64x64xf32, #tpu.memory_space<vmem>>, vector<64x64xf32>
    %cst_85 = arith.constant dense<0.000000e+00> : vector<2x64xf32>
    %210 = tpu.matmul %208, %209, %cst_85 {dimension_numbers = #tpu.dot_dimension_numbers<[1], [0], [0], [1], [0, 0, 1, 1], [], []>} : vector<2x64xf32>, vector<64x64xf32>, vector<2x64xf32> -> vector<2x64xf32>
    %211 = vector.extract_strided_slice %210 {offsets = [0, 0], sizes = [1, 64], strides = [1, 1]} : vector<2x64xf32> to vector<1x64xf32>
    %212 = vector.broadcast %211 : vector<1x64xf32> to vector<2x64xf32>
    %213 = arith.mulf %171, %212 : vector<2x64xf32>
    %214 = vector.extract_strided_slice %210 {offsets = [1, 0], sizes = [1, 64], strides = [1, 1]} : vector<2x64xf32> to vector<1x64xf32>
    %215 = vector.broadcast %214 : vector<1x64xf32> to vector<2x64xf32>
    %216 = arith.addf %213, %215 : vector<2x64xf32>
    %c0_86 = arith.constant 0 : index
    %c0_87 = arith.constant 0 : index
    %217 = vector.load %arg17[%c0_86, %c0_87] : memref<2x64xf32, #tpu.memory_space<vmem>>, vector<2x64xf32>
    tpu.vector_store %arg17[%c0_86, %c0_87], %216 {strides = array<i32>} : memref<2x64xf32, #tpu.memory_space<vmem>>, vector<2x64xf32>,
    return
  }
}

</mosaic_0001>

<llo_original>
// kernel: _lambda_.1
$region0: #{_lambda_.1}
  #allocation0 [shape = 'u32[]', space=smem, size = 0x4, offset = 0x4, fixed_abs, tag = 'smem constant byte address 0x4 - core index']
  #allocation1 [shape = 'u32[72,128]{1,0:T(1,128)}', space=vmem, size = 0x9000, scoped, tag = 'internal scratch']
  %s0 = inlined_call_operand.vmem [shape: f32[2,768], index: 0, kind: input, shape index: {}]
  %s1 = inlined_call_operand.hbm [shape: bf16[768,512], index: 1, kind: input, shape index: {}]
  %s2 = inlined_call_operand.vmem [shape: f32[1,512], index: 2, kind: input, shape index: {}]
  %s3 = inlined_call_operand.vmem [shape: f32[2,8], index: 3, kind: input, shape index: {}]
  %s4 = inlined_call_operand.hbm [shape: f32[8,512], index: 4, kind: input, shape index: {}]
  %s5 = inlined_call_operand.hbm [shape: bf16[512,256], index: 5, kind: input, shape index: {}]
  %s6 = inlined_call_operand.vmem [shape: f32[1,256], index: 6, kind: input, shape index: {}]
  %s7 = inlined_call_operand.vmem [shape: f32[2,16], index: 7, kind: input, shape index: {}]
  %s8 = inlined_call_operand.hbm [shape: f32[16,256], index: 8, kind: input, shape index: {}]
  %s9 = inlined_call_operand.hbm [shape: bf16[256,128], index: 9, kind: input, shape index: {}]
  %s10 = inlined_call_operand.vmem [shape: f32[1,128], index: 10, kind: input, shape index: {}]
  %s11 = inlined_call_operand.vmem [shape: f32[2,32], index: 11, kind: input, shape index: {}]
  %s12 = inlined_call_operand.vmem [shape: f32[32,128], index: 12, kind: input, shape index: {}]
  %s13 = inlined_call_operand.hbm [shape: bf16[128,64], index: 13, kind: input, shape index: {}]
  %s14 = inlined_call_operand.vmem [shape: f32[1,64], index: 14, kind: input, shape index: {}]
  %s15 = inlined_call_operand.vmem [shape: f32[2,64], index: 15, kind: input, shape index: {}]
  %s16 = inlined_call_operand.vmem [shape: f32[64,64], index: 16, kind: input, shape index: {}]
  %s17 = inlined_call_operand.hbm [shape: f32[2,64], index: 17, kind: output, shape index: {}]
  %s18 = sld [smem:[#allocation0]]
  $region102: #{_lambda_.1} parent=0
    _
  %s20 = ssub.s32 1, %s18
  %s21 = scalar_select 0, %s20, %s18
  $region1: #{_lambda_.1} parent=0
    #allocation2 [shape = 'u8[786432]{0}', space=vmem, size = 0xc0000, scoped, tag = 'input window, operand 1, single buffered']
    #allocation3 [shape = 's32[1]{0}', space=sflag, size = 0x4, scoped, tag = 'scoped memory for _lambda_.1']
    #allocation4 [shape = 's32[1]{0}', space=sflag, size = 0x4, scoped, tag = 'scoped memory for _lambda_.1']
    #allocation5 [shape = 'u8[16384]{0}', space=vmem, size = 0x4000, scoped, tag = 'input window, operand 4, single buffered']
    #allocation6 [shape = 's32[1]{0}', space=sflag, size = 0x4, scoped, tag = 'scoped memory for _lambda_.1']
    #allocation7 [shape = 'u8[262144]{0}', space=vmem, size = 0x40000, scoped, tag = 'input window, operand 5, single buffered']
    #allocation8 [shape = 'u8[16384]{0}', space=vmem, size = 0x4000, scoped, tag = 'input window, operand 8, single buffered']
    #allocation9 [shape = 's32[1]{0}', space=sflag, size = 0x4, scoped, tag = 'scoped memory for _lambda_.1']
    #allocation10 [shape = 'u8[65536]{0}', space=vmem, size = 0x10000, scoped, tag = 'input window, operand 9, single buffered']
    #allocation11 [shape = 'u8[32768]{0}', space=vmem, size = 0x8000, scoped, tag = 'input window, operand 13, single buffered']
    #allocation12 [shape = 's32[1]{0}', space=sflag, size = 0x4, scoped, tag = 'scoped memory for _lambda_.1']
    #allocation13 [shape = 'u8[1024]{0}', space=vmem, size = 0x400, scoped, tag = 'output window, operand 0, single buffered']
    %22 = vsyncpa [#allocation3], 0
    %23 = vsyncpa [#allocation6], 0
    %24 = vsyncpa [#allocation9], 0
    %25 = vsyncpa [#allocation12], 0
    %26 = vsyncpa [#allocation4], 0
    // Predicated region
    $region2: #{_lambda_.1} parent=1 // pred_check
      _
    $region3: #{_lambda_.1} parent=1 // pred_check_branch
      %28 = sbr.rel (0) target = $region5
    $region4: #{_lambda_.1} parent=1 // pred_region
      _
    $region5: #{_lambda_.1} parent=1 // pred_fallthru
      _
    // Predicated region
    $region6: #{_lambda_.1} parent=1 // pred_check
      _
    $region7: #{_lambda_.1} parent=1 // pred_check_branch
      %30 = sbr.rel (0) target = $region9
    $region8: #{_lambda_.1} parent=1 // pred_region
      %32 = vsyncadd [#allocation3], 0
      %s33 = sshll.u32 %s1, 4
      %s34 = int_to_ptr.hbm [resolvable:$true] %s33
      %s35 = sshll.u32 [#allocation2], 4
      %s36 = int_to_ptr.vmem [resolvable:$true] %s35
      %41 = dma.hbm_to_vmem [thread:$0]  %s34, 24576, %s36, [#allocation3], 256, 256, 16
    $region9: #{_lambda_.1} parent=1 // pred_fallthru
      _
    // Predicated region
    $region10: #{_lambda_.1} parent=1 // pred_check
      _
    $region11: #{_lambda_.1} parent=1 // pred_check_branch
      %43 = sbr.rel (0) target = $region13
    $region12: #{_lambda_.1} parent=1 // pred_region
      _
    $region13: #{_lambda_.1} parent=1 // pred_fallthru
      _
    // Predicated region
    $region14: #{_lambda_.1} parent=1 // pred_check
      _
    $region15: #{_lambda_.1} parent=1 // pred_check_branch
      %45 = sbr.rel (0) target = $region17
    $region16: #{_lambda_.1} parent=1 // pred_region
      _
    $region17: #{_lambda_.1} parent=1 // pred_fallthru
      _
    // Predicated region
    $region18: #{_lambda_.1} parent=1 // pred_check
      _
    $region19: #{_lambda_.1} parent=1 // pred_check_branch
      %47 = sbr.rel (0) target = $region21
    $region20: #{_lambda_.1} parent=1 // pred_region
      %49 = vsyncadd [#allocation6], 0
      %s51 = sshll.u32 %s4, 4
      %s52 = int_to_ptr.hbm [resolvable:$true] %s51
      %s53 = sshll.u32 [#allocation5], 4
      %s54 = int_to_ptr.vmem [resolvable:$true] %s53
      %56 = dma.hbm_to_vmem [thread:$0]  %s52, 512, %s54, [#allocation6]
    $region21: #{_lambda_.1} parent=1 // pred_fallthru
      _
    // Predicated region
    $region22: #{_lambda_.1} parent=1 // pred_check
      _
    $region23: #{_lambda_.1} parent=1 // pred_check_branch
      %58 = sbr.rel (0) target = $region25
    $region24: #{_lambda_.1} parent=1 // pred_region
      %60 = vsyncadd [#allocation6], 0
      %s61 = sshll.u32 %s5, 4
      %s62 = int_to_ptr.hbm [resolvable:$true] %s61
      %s63 = sshll.u32 [#allocation7], 4
      %s64 = int_to_ptr.vmem [resolvable:$true] %s63
      %69 = dma.hbm_to_vmem [thread:$0]  %s62, 8192, %s64, [#allocation6], 128, 128, 8
    $region25: #{_lambda_.1} parent=1 // pred_fallthru
      _
    // Predicated region
    $region26: #{_lambda_.1} parent=1 // pred_check
      _
    $region27: #{_lambda_.1} parent=1 // pred_check_branch
      %71 = sbr.rel (0) target = $region29
    $region28: #{_lambda_.1} parent=1 // pred_region
      _
    $region29: #{_lambda_.1} parent=1 // pred_fallthru
      _
    // Predicated region
    $region30: #{_lambda_.1} parent=1 // pred_check
      _
    $region31: #{_lambda_.1} parent=1 // pred_check_branch
      %73 = sbr.rel (0) target = $region33
    $region32: #{_lambda_.1} parent=1 // pred_region
      _
    $region33: #{_lambda_.1} parent=1 // pred_fallthru
      _
    // Predicated region
    $region34: #{_lambda_.1} parent=1 // pred_check
      _
    $region35: #{_lambda_.1} parent=1 // pred_check_branch
      %75 = sbr.rel (0) target = $region37
    $region36: #{_lambda_.1} parent=1 // pred_region
      %77 = vsyncadd [#allocation9], 0
      %s78 = sshll.u32 %s8, 4
      %s79 = int_to_ptr.hbm [resolvable:$true] %s78
      %s80 = sshll.u32 [#allocation8], 4
      %s81 = int_to_ptr.vmem [resolvable:$true] %s80
      %86 = dma.hbm_to_vmem [thread:$0]  %s79, 512, %s81, [#allocation9], 256, 256, 16
    $region37: #{_lambda_.1} parent=1 // pred_fallthru
      _
    // Predicated region
    $region38: #{_lambda_.1} parent=1 // pred_check
      _
    $region39: #{_lambda_.1} parent=1 // pred_check_branch
      %88 = sbr.rel (0) target = $region41
    $region40: #{_lambda_.1} parent=1 // pred_region
      %90 = vsyncadd [#allocation9], 0
      %s91 = sshll.u32 %s9, 4
      %s92 = int_to_ptr.hbm [resolvable:$true] %s91
      %s93 = sshll.u32 [#allocation10], 4
      %s94 = int_to_ptr.vmem [resolvable:$true] %s93
      %99 = dma.hbm_to_vmem [thread:$0]  %s92, 2048, %s94, [#allocation9], 64, 64, 4
    $region41: #{_lambda_.1} parent=1 // pred_fallthru
      _
    // Predicated region
    $region42: #{_lambda_.1} parent=1 // pred_check
      _
    $region43: #{_lambda_.1} parent=1 // pred_check_branch
      %101 = sbr.rel (0) target = $region45
    $region44: #{_lambda_.1} parent=1 // pred_region
      _
    $region45: #{_lambda_.1} parent=1 // pred_fallthru
      _
    // Predicated region
    $region46: #{_lambda_.1} parent=1 // pred_check
      _
    $region47: #{_lambda_.1} parent=1 // pred_check_branch
      %103 = sbr.rel (0) target = $region49
    $region48: #{_lambda_.1} parent=1 // pred_region
      _
    $region49: #{_lambda_.1} parent=1 // pred_fallthru
      _
    // Predicated region
    $region50: #{_lambda_.1} parent=1 // pred_check
      _
    $region51: #{_lambda_.1} parent=1 // pred_check_branch
      %105 = sbr.rel (0) target = $region53
    $region52: #{_lambda_.1} parent=1 // pred_region
      _
    $region53: #{_lambda_.1} parent=1 // pred_fallthru
      _
    // Predicated region
    $region54: #{_lambda_.1} parent=1 // pred_check
      _
    $region55: #{_lambda_.1} parent=1 // pred_check_branch
      %107 = sbr.rel (0) target = $region57
    $region56: #{_lambda_.1} parent=1 // pred_region
      %109 = vsyncadd [#allocation12], 0
      %s110 = sshll.u32 %s13, 4
      %s111 = int_to_ptr.hbm [resolvable:$true] %s110
      %s112 = sshll.u32 [#allocation11], 4
      %s113 = int_to_ptr.vmem [resolvable:$true] %s112
      %118 = dma.hbm_to_vmem [thread:$0]  %s111, 1024, %s113, [#allocation12], 64, 64, 4
    $region57: #{_lambda_.1} parent=1 // pred_fallthru
      _
    // Predicated region
    $region58: #{_lambda_.1} parent=1 // pred_check
      _
    $region59: #{_lambda_.1} parent=1 // pred_check_branch
      %120 = sbr.rel (0) target = $region61
    $region60: #{_lambda_.1} parent=1 // pred_region
      _
    $region61: #{_lambda_.1} parent=1 // pred_fallthru
      _
    // Predicated region
    $region62: #{_lambda_.1} parent=1 // pred_check
      _
    $region63: #{_lambda_.1} parent=1 // pred_check_branch
      %122 = sbr.rel (0) target = $region65
    $region64: #{_lambda_.1} parent=1 // pred_region
      _
    $region65: #{_lambda_.1} parent=1 // pred_fallthru
      _
    // Predicated region
    $region66: #{_lambda_.1} parent=1 // pred_check
      _
    $region67: #{_lambda_.1} parent=1 // pred_check_branch
      %124 = sbr.rel (0) target = $region69
    $region68: #{_lambda_.1} parent=1 // pred_region
      _
    $region69: #{_lambda_.1} parent=1 // pred_fallthru
      _
    // Predicated region
    $region70: #{_lambda_.1} parent=1 // pred_check
      _
    $region71: #{_lambda_.1} parent=1 // pred_check_branch
      %126 = sbr.rel (0) target = $region73
    $region72: #{_lambda_.1} parent=1 // pred_region
      %128 = dma.done [#allocation3], 24576
    $region73: #{_lambda_.1} parent=1 // pred_fallthru
      _
    // Predicated region
    $region74: #{_lambda_.1} parent=1 // pred_check
      _
    $region75: #{_lambda_.1} parent=1 // pred_check_branch
      %130 = sbr.rel (0) target = $region77
    $region76: #{_lambda_.1} parent=1 // pred_region
      %132 = dma.done [#allocation6], 512
    $region77: #{_lambda_.1} parent=1 // pred_fallthru
      _
    // Predicated region
    $region78: #{_lambda_.1} parent=1 // pred_check
      _
    $region79: #{_lambda_.1} parent=1 // pred_check_branch
      %134 = sbr.rel (0) target = $region81
    $region80: #{_lambda_.1} parent=1 // pred_region
      %136 = dma.done [#allocation6], 8192
    $region81: #{_lambda_.1} parent=1 // pred_fallthru
      _
    // Predicated region
    $region82: #{_lambda_.1} parent=1 // pred_check
      _
    $region83: #{_lambda_.1} parent=1 // pred_check_branch
      %138 = sbr.rel (0) target = $region85
    $region84: #{_lambda_.1} parent=1 // pred_region
      %140 = dma.done [#allocation9], 512
    $region85: #{_lambda_.1} parent=1 // pred_fallthru
      _
    // Predicated region
    $region86: #{_lambda_.1} parent=1 // pred_check
      _
    $region87: #{_lambda_.1} parent=1 // pred_check_branch
      %142 = sbr.rel (0) target = $region89
    $region88: #{_lambda_.1} parent=1 // pred_region
      %144 = dma.done [#allocation9], 2048
    $region89: #{_lambda_.1} parent=1 // pred_fallthru
      _
    // Predicated region
    $region90: #{_lambda_.1} parent=1 // pred_check
      _
    $region91: #{_lambda_.1} parent=1 // pred_check_branch
      %146 = sbr.rel (0) target = $region93
    $region92: #{_lambda_.1} parent=1 // pred_region
      %148 = dma.done [#allocation12], 1024
    $region93: #{_lambda_.1} parent=1 // pred_fallthru
      _
    %v149 = vld [vmem:[%s0] sm:$0xff]
    %v150 = vld [vmem:[%s0 + $0x8] sm:$0xf]
    %v151 = vld [vmem:[#allocation2] sm:$0xff]
    %v152 = vld [vmem:[#allocation2 + $0x8] sm:$0xff]
    %v153 = vld [vmem:[#allocation2 + $0x10] sm:$0xff]
    %v154 = vld [vmem:[#allocation2 + $0x18] sm:$0xff]
    %v155 = vld [vmem:[#allocation2 + $0x20] sm:$0xff]
    %v156 = vld [vmem:[#allocation2 + $0x28] sm:$0xff]
    %v157 = vld [vmem:[#allocation2 + $0x30] sm:$0xff]
    %v158 = vld [vmem:[#allocation2 + $0x38] sm:$0xff]
    %v159 = vld [vmem:[#allocation2 + $0x40] sm:$0xff]
    %v160 = vld [vmem:[#allocation2 + $0x48] sm:$0xff]
    %v161 = vld [vmem:[#allocation2 + $0x50] sm:$0xff]
    %v162 = vld [vmem:[#allocation2 + $0x58] sm:$0xff]
    %v163 = vld [vmem:[#allocation2 + $0x60] sm:$0xff]
    %v164 = vld [vmem:[#allocation2 + $0x68] sm:$0xff]
    %v165 = vld [vmem:[#allocation2 + $0x70] sm:$0xff]
    %v166 = vld [vmem:[#allocation2 + $0x78] sm:$0xff]
    %v167 = vld [vmem:[#allocation2 + $0x80] sm:$0xff]
    %v168 = vld [vmem:[#allocation2 + $0x88] sm:$0xff]
    %v169 = vld [vmem:[#allocation2 + $0x90] sm:$0xff]
    %v170 = vld [vmem:[#allocation2 + $0x98] sm:$0xff]
    %v171 = vld [vmem:[#allocation2 + $0xa0] sm:$0xff]
    %v172 = vld [vmem:[#allocation2 + $0xa8] sm:$0xff]
    %v173 = vld [vmem:[#allocation2 + $0xb0] sm:$0xff]
    %v174 = vld [vmem:[#allocation2 + $0xb8] sm:$0xff]
    %v175 = vld [vmem:[#allocation2 + $0xc0] sm:$0xff]
    %v176 = vld [vmem:[#allocation2 + $0xc8] sm:$0xff]
    %v177 = vld [vmem:[#allocation2 + $0xd0] sm:$0xff]
    %v178 = vld [vmem:[#allocation2 + $0xd8] sm:$0xff]
    %v179 = vld [vmem:[#allocation2 + $0xe0] sm:$0xff]
    %v180 = vld [vmem:[#allocation2 + $0xe8] sm:$0xff]
    %v181 = vld [vmem:[#allocation2 + $0xf0] sm:$0xff]
    %v182 = vld [vmem:[#allocation2 + $0xf8] sm:$0xff]
    %v183 = vld [vmem:[#allocation2 + $0x100] sm:$0xff]
    %v184 = vld [vmem:[#allocation2 + $0x108] sm:$0xff]
    %v185 = vld [vmem:[#allocation2 + $0x110] sm:$0xff]
    %v186 = vld [vmem:[#allocation2 + $0x118] sm:$0xff]
    %v187 = vld [vmem:[#allocation2 + $0x120] sm:$0xff]
    %v188 = vld [vmem:[#allocation2 + $0x128] sm:$0xff]
    %v189 = vld [vmem:[#allocation2 + $0x130] sm:$0xff]
    %v190 = vld [vmem:[#allocation2 + $0x138] sm:$0xff]
    %v191 = vld [vmem:[#allocation2 + $0x140] sm:$0xff]
    %v192 = vld [vmem:[#allocation2 + $0x148] sm:$0xff]
    %v193 = vld [vmem:[#allocation2 + $0x150] sm:$0xff]
    %v194 = vld [vmem:[#allocation2 + $0x158] sm:$0xff]
    %v195 = vld [vmem:[#allocation2 + $0x160] sm:$0xff]
    %v196 = vld [vmem:[#allocation2 + $0x168] sm:$0xff]
    %v197 = vld [vmem:[#allocation2 + $0x170] sm:$0xff]
    %v198 = vld [vmem:[#allocation2 + $0x178] sm:$0xff]
    %v199 = vld [vmem:[#allocation2 + $0x180] sm:$0xff]
    %v200 = vld [vmem:[#allocation2 + $0x188] sm:$0xff]
    %v201 = vld [vmem:[#allocation2 + $0x190] sm:$0xff]
    %v202 = vld [vmem:[#allocation2 + $0x198] sm:$0xff]
    %v203 = vld [vmem:[#allocation2 + $0x1a0] sm:$0xff]
    %v204 = vld [vmem:[#allocation2 + $0x1a8] sm:$0xff]
    %v205 = vld [vmem:[#allocation2 + $0x1b0] sm:$0xff]
    %v206 = vld [vmem:[#allocation2 + $0x1b8] sm:$0xff]
    %v207 = vld [vmem:[#allocation2 + $0x1c0] sm:$0xff]
    %v208 = vld [vmem:[#allocation2 + $0x1c8] sm:$0xff]
    %v209 = vld [vmem:[#allocation2 + $0x1d0] sm:$0xff]
    %v210 = vld [vmem:[#allocation2 + $0x1d8] sm:$0xff]
    %v211 = vld [vmem:[#allocation2 + $0x1e0] sm:$0xff]
    %v212 = vld [vmem:[#allocation2 + $0x1e8] sm:$0xff]
    %v213 = vld [vmem:[#allocation2 + $0x1f0] sm:$0xff]
    %v214 = vld [vmem:[#allocation2 + $0x1f8] sm:$0xff]
    %v215 = vld [vmem:[#allocation2 + $0x200] sm:$0xff]
    %v216 = vld [vmem:[#allocation2 + $0x208] sm:$0xff]
    %v217 = vld [vmem:[#allocation2 + $0x210] sm:$0xff]
    %v218 = vld [vmem:[#allocation2 + $0x218] sm:$0xff]
    %v219 = vld [vmem:[#allocation2 + $0x220] sm:$0xff]
    %v220 = vld [vmem:[#allocation2 + $0x228] sm:$0xff]
    %v221 = vld [vmem:[#allocation2 + $0x230] sm:$0xff]
    %v222 = vld [vmem:[#allocation2 + $0x238] sm:$0xff]
    %v223 = vld [vmem:[#allocation2 + $0x240] sm:$0xff]
    %v224 = vld [vmem:[#allocation2 + $0x248] sm:$0xff]
    %v225 = vld [vmem:[#allocation2 + $0x250] sm:$0xff]
    %v226 = vld [vmem:[#allocation2 + $0x258] sm:$0xff]
    %v227 = vld [vmem:[#allocation2 + $0x260] sm:$0xff]
    %v228 = vld [vmem:[#allocation2 + $0x268] sm:$0xff]
    %v229 = vld [vmem:[#allocation2 + $0x270] sm:$0xff]
    %v230 = vld [vmem:[#allocation2 + $0x278] sm:$0xff]
    %v231 = vld [vmem:[#allocation2 + $0x280] sm:$0xff]
    %v232 = vld [vmem:[#allocation2 + $0x288] sm:$0xff]
    %v233 = vld [vmem:[#allocation2 + $0x290] sm:$0xff]
    %v234 = vld [vmem:[#allocation2 + $0x298] sm:$0xff]
    %v235 = vld [vmem:[#allocation2 + $0x2a0] sm:$0xff]
    %v236 = vld [vmem:[#allocation2 + $0x2a8] sm:$0xff]
    %v237 = vld [vmem:[#allocation2 + $0x2b0] sm:$0xff]
    %v238 = vld [vmem:[#allocation2 + $0x2b8] sm:$0xff]
    %v239 = vld [vmem:[#allocation2 + $0x2c0] sm:$0xff]
    %v240 = vld [vmem:[#allocation2 + $0x2c8] sm:$0xff]
    %v241 = vld [vmem:[#allocation2 + $0x2d0] sm:$0xff]
    %v242 = vld [vmem:[#allocation2 + $0x2d8] sm:$0xff]
    %v243 = vld [vmem:[#allocation2 + $0x2e0] sm:$0xff]
    %v244 = vld [vmem:[#allocation2 + $0x2e8] sm:$0xff]
    %v245 = vld [vmem:[#allocation2 + $0x2f0] sm:$0xff]
    %v246 = vld [vmem:[#allocation2 + $0x2f8] sm:$0xff]
    %v247 = vld [vmem:[#allocation2 + $0x300] sm:$0xff]
    %v248 = vld [vmem:[#allocation2 + $0x308] sm:$0xff]
    %v249 = vld [vmem:[#allocation2 + $0x310] sm:$0xff]
    %v250 = vld [vmem:[#allocation2 + $0x318] sm:$0xff]
    %v251 = vld [vmem:[#allocation2 + $0x320] sm:$0xff]
    %v252 = vld [vmem:[#allocation2 + $0x328] sm:$0xff]
    %v253 = vld [vmem:[#allocation2 + $0x330] sm:$0xff]
    %v254 = vld [vmem:[#allocation2 + $0x338] sm:$0xff]
    %v255 = vld [vmem:[#allocation2 + $0x340] sm:$0xff]
    %v256 = vld [vmem:[#allocation2 + $0x348] sm:$0xff]
    %v257 = vld [vmem:[#allocation2 + $0x350] sm:$0xff]
    %v258 = vld [vmem:[#allocation2 + $0x358] sm:$0xff]
    %v259 = vld [vmem:[#allocation2 + $0x360] sm:$0xff]
    %v260 = vld [vmem:[#allocation2 + $0x368] sm:$0xff]
    %v261 = vld [vmem:[#allocation2 + $0x370] sm:$0xff]
    %v262 = vld [vmem:[#allocation2 + $0x378] sm:$0xff]
    %v263 = vld [vmem:[#allocation2 + $0x380] sm:$0xff]
    %v264 = vld [vmem:[#allocation2 + $0x388] sm:$0xff]
    %v265 = vld [vmem:[#allocation2 + $0x390] sm:$0xff]
    %v266 = vld [vmem:[#allocation2 + $0x398] sm:$0xff]
    %v267 = vld [vmem:[#allocation2 + $0x3a0] sm:$0xff]
    %v268 = vld [vmem:[#allocation2 + $0x3a8] sm:$0xff]
    %v269 = vld [vmem:[#allocation2 + $0x3b0] sm:$0xff]
    %v270 = vld [vmem:[#allocation2 + $0x3b8] sm:$0xff]
    %v271 = vld [vmem:[#allocation2 + $0x3c0] sm:$0xff]
    %v272 = vld [vmem:[#allocation2 + $0x3c8] sm:$0xff]
    %v273 = vld [vmem:[#allocation2 + $0x3d0] sm:$0xff]
    %v274 = vld [vmem:[#allocation2 + $0x3d8] sm:$0xff]
    %v275 = vld [vmem:[#allocation2 + $0x3e0] sm:$0xff]
    %v276 = vld [vmem:[#allocation2 + $0x3e8] sm:$0xff]
    %v277 = vld [vmem:[#allocation2 + $0x3f0] sm:$0xff]
    %v278 = vld [vmem:[#allocation2 + $0x3f8] sm:$0xff]
    %v279 = vld [vmem:[#allocation2 + $0x400] sm:$0xff]
    %v280 = vld [vmem:[#allocation2 + $0x408] sm:$0xff]
    %v281 = vld [vmem:[#allocation2 + $0x410] sm:$0xff]
    %v282 = vld [vmem:[#allocation2 + $0x418] sm:$0xff]
    %v283 = vld [vmem:[#allocation2 + $0x420] sm:$0xff]
    %v284 = vld [vmem:[#allocation2 + $0x428] sm:$0xff]
    %v285 = vld [vmem:[#allocation2 + $0x430] sm:$0xff]
    %v286 = vld [vmem:[#allocation2 + $0x438] sm:$0xff]
    %v287 = vld [vmem:[#allocation2 + $0x440] sm:$0xff]
    %v288 = vld [vmem:[#allocation2 + $0x448] sm:$0xff]
    %v289 = vld [vmem:[#allocation2 + $0x450] sm:$0xff]
    %v290 = vld [vmem:[#allocation2 + $0x458] sm:$0xff]
    %v291 = vld [vmem:[#allocation2 + $0x460] sm:$0xff]
    %v292 = vld [vmem:[#allocation2 + $0x468] sm:$0xff]
    %v293 = vld [vmem:[#allocation2 + $0x470] sm:$0xff]
    %v294 = vld [vmem:[#allocation2 + $0x478] sm:$0xff]
    %v295 = vld [vmem:[#allocation2 + $0x480] sm:$0xff]
    %v296 = vld [vmem:[#allocation2 + $0x488] sm:$0xff]
    %v297 = vld [vmem:[#allocation2 + $0x490] sm:$0xff]
    %v298 = vld [vmem:[#allocation2 + $0x498] sm:$0xff]
    %v299 = vld [vmem:[#allocation2 + $0x4a0] sm:$0xff]
    %v300 = vld [vmem:[#allocation2 + $0x4a8] sm:$0xff]
    %v301 = vld [vmem:[#allocation2 + $0x4b0] sm:$0xff]
    %v302 = vld [vmem:[#allocation2 + $0x4b8] sm:$0xff]
    %v303 = vld [vmem:[#allocation2 + $0x4c0] sm:$0xff]
    %v304 = vld [vmem:[#allocation2 + $0x4c8] sm:$0xff]
    %v305 = vld [vmem:[#allocation2 + $0x4d0] sm:$0xff]
    %v306 = vld [vmem:[#allocation2 + $0x4d8] sm:$0xff]
    %v307 = vld [vmem:[#allocation2 + $0x4e0] sm:$0xff]
    %v308 = vld [vmem:[#allocation2 + $0x4e8] sm:$0xff]
    %v309 = vld [vmem:[#allocation2 + $0x4f0] sm:$0xff]
    %v310 = vld [vmem:[#allocation2 + $0x4f8] sm:$0xff]
    %v311 = vld [vmem:[#allocation2 + $0x500] sm:$0xff]
    %v312 = vld [vmem:[#allocation2 + $0x508] sm:$0xff]
    %v313 = vld [vmem:[#allocation2 + $0x510] sm:$0xff]
    %v314 = vld [vmem:[#allocation2 + $0x518] sm:$0xff]
    %v315 = vld [vmem:[#allocation2 + $0x520] sm:$0xff]
    %v316 = vld [vmem:[#allocation2 + $0x528] sm:$0xff]
    %v317 = vld [vmem:[#allocation2 + $0x530] sm:$0xff]
    %v318 = vld [vmem:[#allocation2 + $0x538] sm:$0xff]
    %v319 = vld [vmem:[#allocation2 + $0x540] sm:$0xff]
    %v320 = vld [vmem:[#allocation2 + $0x548] sm:$0xff]
    %v321 = vld [vmem:[#allocation2 + $0x550] sm:$0xff]
    %v322 = vld [vmem:[#allocation2 + $0x558] sm:$0xff]
    %v323 = vld [vmem:[#allocation2 + $0x560] sm:$0xff]
    %v324 = vld [vmem:[#allocation2 + $0x568] sm:$0xff]
    %v325 = vld [vmem:[#allocation2 + $0x570] sm:$0xff]
    %v326 = vld [vmem:[#allocation2 + $0x578] sm:$0xff]
    %v327 = vld [vmem:[#allocation2 + $0x580] sm:$0xff]
    %v328 = vld [vmem:[#allocation2 + $0x588] sm:$0xff]
    %v329 = vld [vmem:[#allocation2 + $0x590] sm:$0xff]
    %v330 = vld [vmem:[#allocation2 + $0x598] sm:$0xff]
    %v331 = vld [vmem:[#allocation2 + $0x5a0] sm:$0xff]
    %v332 = vld [vmem:[#allocation2 + $0x5a8] sm:$0xff]
    %v333 = vld [vmem:[#allocation2 + $0x5b0] sm:$0xff]
    %v334 = vld [vmem:[#allocation2 + $0x5b8] sm:$0xff]
    %v335 = vld [vmem:[#allocation2 + $0x5c0] sm:$0xff]
    %v336 = vld [vmem:[#allocation2 + $0x5c8] sm:$0xff]
    %v337 = vld [vmem:[#allocation2 + $0x5d0] sm:$0xff]
    %v338 = vld [vmem:[#allocation2 + $0x5d8] sm:$0xff]
    %v339 = vld [vmem:[#allocation2 + $0x5e0] sm:$0xff]
    %v340 = vld [vmem:[#allocation2 + $0x5e8] sm:$0xff]
    %v341 = vld [vmem:[#allocation2 + $0x5f0] sm:$0xff]
    %v342 = vld [vmem:[#allocation2 + $0x5f8] sm:$0xff]
    %v343 = vunpack.c.l.bf16 %v151
    %v344 = vunpack.c.h.bf16 %v151
    %v345 = vunpack.c.l.bf16 %v152
    %v346 = vunpack.c.h.bf16 %v152
    %v347 = vunpack.c.l.bf16 %v153
    %v348 = vunpack.c.h.bf16 %v153
    %v349 = vunpack.c.l.bf16 %v154
    %v350 = vunpack.c.h.bf16 %v154
    %v351 = vunpack.c.l.bf16 %v155
    %v352 = vunpack.c.h.bf16 %v155
    %v353 = vunpack.c.l.bf16 %v156
    %v354 = vunpack.c.h.bf16 %v156
    %v355 = vunpack.c.l.bf16 %v157
    %v356 = vunpack.c.h.bf16 %v157
    %v357 = vunpack.c.l.bf16 %v158
    %v358 = vunpack.c.h.bf16 %v158
    %v359 = vunpack.c.l.bf16 %v159
    %v360 = vunpack.c.h.bf16 %v159
    %v361 = vunpack.c.l.bf16 %v160
    %v362 = vunpack.c.h.bf16 %v160
    %v363 = vunpack.c.l.bf16 %v161
    %v364 = vunpack.c.h.bf16 %v161
    %v365 = vunpack.c.l.bf16 %v162
    %v366 = vunpack.c.h.bf16 %v162
    %v367 = vunpack.c.l.bf16 %v163
    %v368 = vunpack.c.h.bf16 %v163
    %v369 = vunpack.c.l.bf16 %v164
    %v370 = vunpack.c.h.bf16 %v164
    %v371 = vunpack.c.l.bf16 %v165
    %v372 = vunpack.c.h.bf16 %v165
    %v373 = vunpack.c.l.bf16 %v166
    %v374 = vunpack.c.h.bf16 %v166
    %v375 = vunpack.c.l.bf16 %v167
    %v376 = vunpack.c.h.bf16 %v167
    %v377 = vunpack.c.l.bf16 %v168
    %v378 = vunpack.c.h.bf16 %v168
    %v379 = vunpack.c.l.bf16 %v169
    %v380 = vunpack.c.h.bf16 %v169
    %v381 = vunpack.c.l.bf16 %v170
    %v382 = vunpack.c.h.bf16 %v170
    %v383 = vunpack.c.l.bf16 %v171
    %v384 = vunpack.c.h.bf16 %v171
    %v385 = vunpack.c.l.bf16 %v172
    %v386 = vunpack.c.h.bf16 %v172
    %v387 = vunpack.c.l.bf16 %v173
    %v388 = vunpack.c.h.bf16 %v173
    %v389 = vunpack.c.l.bf16 %v174
    %v390 = vunpack.c.h.bf16 %v174
    %v391 = vunpack.c.l.bf16 %v175
    %v392 = vunpack.c.h.bf16 %v175
    %v393 = vunpack.c.l.bf16 %v176
    %v394 = vunpack.c.h.bf16 %v176
    %v395 = vunpack.c.l.bf16 %v177
    %v396 = vunpack.c.h.bf16 %v177
    %v397 = vunpack.c.l.bf16 %v178
    %v398 = vunpack.c.h.bf16 %v178
    %v399 = vunpack.c.l.bf16 %v179
    %v400 = vunpack.c.h.bf16 %v179
    %v401 = vunpack.c.l.bf16 %v180
    %v402 = vunpack.c.h.bf16 %v180
    %v403 = vunpack.c.l.bf16 %v181
    %v404 = vunpack.c.h.bf16 %v181
    %v405 = vunpack.c.l.bf16 %v182
    %v406 = vunpack.c.h.bf16 %v182
    %v407 = vunpack.c.l.bf16 %v183
    %v408 = vunpack.c.h.bf16 %v183
    %v409 = vunpack.c.l.bf16 %v184
    %v410 = vunpack.c.h.bf16 %v184
    %v411 = vunpack.c.l.bf16 %v185
    %v412 = vunpack.c.h.bf16 %v185
    %v413 = vunpack.c.l.bf16 %v186
    %v414 = vunpack.c.h.bf16 %v186
    %v415 = vunpack.c.l.bf16 %v187
    %v416 = vunpack.c.h.bf16 %v187
    %v417 = vunpack.c.l.bf16 %v188
    %v418 = vunpack.c.h.bf16 %v188
    %v419 = vunpack.c.l.bf16 %v189
    %v420 = vunpack.c.h.bf16 %v189
    %v421 = vunpack.c.l.bf16 %v190
    %v422 = vunpack.c.h.bf16 %v190
    %v423 = vunpack.c.l.bf16 %v191
    %v424 = vunpack.c.h.bf16 %v191
    %v425 = vunpack.c.l.bf16 %v192
    %v426 = vunpack.c.h.bf16 %v192
    %v427 = vunpack.c.l.bf16 %v193
    %v428 = vunpack.c.h.bf16 %v193
    %v429 = vunpack.c.l.bf16 %v194
    %v430 = vunpack.c.h.bf16 %v194
    %v431 = vunpack.c.l.bf16 %v195
    %v432 = vunpack.c.h.bf16 %v195
    %v433 = vunpack.c.l.bf16 %v196
    %v434 = vunpack.c.h.bf16 %v196
    %v435 = vunpack.c.l.bf16 %v197
    %v436 = vunpack.c.h.bf16 %v197
    %v437 = vunpack.c.l.bf16 %v198
    %v438 = vunpack.c.h.bf16 %v198
    %v439 = vunpack.c.l.bf16 %v199
    %v440 = vunpack.c.h.bf16 %v199
    %v441 = vunpack.c.l.bf16 %v200
    %v442 = vunpack.c.h.bf16 %v200
    %v443 = vunpack.c.l.bf16 %v201
    %v444 = vunpack.c.h.bf16 %v201
    %v445 = vunpack.c.l.bf16 %v202
    %v446 = vunpack.c.h.bf16 %v202
    %v447 = vunpack.c.l.bf16 %v203
    %v448 = vunpack.c.h.bf16 %v203
    %v449 = vunpack.c.l.bf16 %v204
    %v450 = vunpack.c.h.bf16 %v204
    %v451 = vunpack.c.l.bf16 %v205
    %v452 = vunpack.c.h.bf16 %v205
    %v453 = vunpack.c.l.bf16 %v206
    %v454 = vunpack.c.h.bf16 %v206
    %v455 = vunpack.c.l.bf16 %v207
    %v456 = vunpack.c.h.bf16 %v207
    %v457 = vunpack.c.l.bf16 %v208
    %v458 = vunpack.c.h.bf16 %v208
    %v459 = vunpack.c.l.bf16 %v209
    %v460 = vunpack.c.h.bf16 %v209
    %v461 = vunpack.c.l.bf16 %v210
    %v462 = vunpack.c.h.bf16 %v210
    %v463 = vunpack.c.l.bf16 %v211
    %v464 = vunpack.c.h.bf16 %v211
    %v465 = vunpack.c.l.bf16 %v212
    %v466 = vunpack.c.h.bf16 %v212
    %v467 = vunpack.c.l.bf16 %v213
    %v468 = vunpack.c.h.bf16 %v213
    %v469 = vunpack.c.l.bf16 %v214
    %v470 = vunpack.c.h.bf16 %v214
    %v471 = vunpack.c.l.bf16 %v215
    %v472 = vunpack.c.h.bf16 %v215
    %v473 = vunpack.c.l.bf16 %v216
    %v474 = vunpack.c.h.bf16 %v216
    %v475 = vunpack.c.l.bf16 %v217
    %v476 = vunpack.c.h.bf16 %v217
    %v477 = vunpack.c.l.bf16 %v218
    %v478 = vunpack.c.h.bf16 %v218
    %v479 = vunpack.c.l.bf16 %v219
    %v480 = vunpack.c.h.bf16 %v219
    %v481 = vunpack.c.l.bf16 %v220
    %v482 = vunpack.c.h.bf16 %v220
    %v483 = vunpack.c.l.bf16 %v221
    %v484 = vunpack.c.h.bf16 %v221
    %v485 = vunpack.c.l.bf16 %v222
    %v486 = vunpack.c.h.bf16 %v222
    %v487 = vunpack.c.l.bf16 %v223
    %v488 = vunpack.c.h.bf16 %v223
    %v489 = vunpack.c.l.bf16 %v224
    %v490 = vunpack.c.h.bf16 %v224
    %v491 = vunpack.c.l.bf16 %v225
    %v492 = vunpack.c.h.bf16 %v225
    %v493 = vunpack.c.l.bf16 %v226
    %v494 = vunpack.c.h.bf16 %v226
    %v495 = vunpack.c.l.bf16 %v227
    %v496 = vunpack.c.h.bf16 %v227
    %v497 = vunpack.c.l.bf16 %v228
    %v498 = vunpack.c.h.bf16 %v228
    %v499 = vunpack.c.l.bf16 %v229
    %v500 = vunpack.c.h.bf16 %v229
    %v501 = vunpack.c.l.bf16 %v230
    %v502 = vunpack.c.h.bf16 %v230
    %v503 = vunpack.c.l.bf16 %v231
    %v504 = vunpack.c.h.bf16 %v231
    %v505 = vunpack.c.l.bf16 %v232
    %v506 = vunpack.c.h.bf16 %v232
    %v507 = vunpack.c.l.bf16 %v233
    %v508 = vunpack.c.h.bf16 %v233
    %v509 = vunpack.c.l.bf16 %v234
    %v510 = vunpack.c.h.bf16 %v234
    %v511 = vunpack.c.l.bf16 %v235
    %v512 = vunpack.c.h.bf16 %v235
    %v513 = vunpack.c.l.bf16 %v236
    %v514 = vunpack.c.h.bf16 %v236
    %v515 = vunpack.c.l.bf16 %v237
    %v516 = vunpack.c.h.bf16 %v237
    %v517 = vunpack.c.l.bf16 %v238
    %v518 = vunpack.c.h.bf16 %v238
    %v519 = vunpack.c.l.bf16 %v239
    %v520 = vunpack.c.h.bf16 %v239
    %v521 = vunpack.c.l.bf16 %v240
    %v522 = vunpack.c.h.bf16 %v240
    %v523 = vunpack.c.l.bf16 %v241
    %v524 = vunpack.c.h.bf16 %v241
    %v525 = vunpack.c.l.bf16 %v242
    %v526 = vunpack.c.h.bf16 %v242
    %v527 = vunpack.c.l.bf16 %v243
    %v528 = vunpack.c.h.bf16 %v243
    %v529 = vunpack.c.l.bf16 %v244
    %v530 = vunpack.c.h.bf16 %v244
    %v531 = vunpack.c.l.bf16 %v245
    %v532 = vunpack.c.h.bf16 %v245
    %v533 = vunpack.c.l.bf16 %v246
    %v534 = vunpack.c.h.bf16 %v246
    %v535 = vunpack.c.l.bf16 %v247
    %v536 = vunpack.c.h.bf16 %v247
    %v537 = vunpack.c.l.bf16 %v248
    %v538 = vunpack.c.h.bf16 %v248
    %v539 = vunpack.c.l.bf16 %v249
    %v540 = vunpack.c.h.bf16 %v249
    %v541 = vunpack.c.l.bf16 %v250
    %v542 = vunpack.c.h.bf16 %v250
    %v543 = vunpack.c.l.bf16 %v251
    %v544 = vunpack.c.h.bf16 %v251
    %v545 = vunpack.c.l.bf16 %v252
    %v546 = vunpack.c.h.bf16 %v252
    %v547 = vunpack.c.l.bf16 %v253
    %v548 = vunpack.c.h.bf16 %v253
    %v549 = vunpack.c.l.bf16 %v254
    %v550 = vunpack.c.h.bf16 %v254
    %v551 = vunpack.c.l.bf16 %v255
    %v552 = vunpack.c.h.bf16 %v255
    %v553 = vunpack.c.l.bf16 %v256
    %v554 = vunpack.c.h.bf16 %v256
    %v555 = vunpack.c.l.bf16 %v257
    %v556 = vunpack.c.h.bf16 %v257
    %v557 = vunpack.c.l.bf16 %v258
    %v558 = vunpack.c.h.bf16 %v258
    %v559 = vunpack.c.l.bf16 %v259
    %v560 = vunpack.c.h.bf16 %v259
    %v561 = vunpack.c.l.bf16 %v260
    %v562 = vunpack.c.h.bf16 %v260
    %v563 = vunpack.c.l.bf16 %v261
    %v564 = vunpack.c.h.bf16 %v261
    %v565 = vunpack.c.l.bf16 %v262
    %v566 = vunpack.c.h.bf16 %v262
    %v567 = vunpack.c.l.bf16 %v263
    %v568 = vunpack.c.h.bf16 %v263
    %v569 = vunpack.c.l.bf16 %v264
    %v570 = vunpack.c.h.bf16 %v264
    %v571 = vunpack.c.l.bf16 %v265
    %v572 = vunpack.c.h.bf16 %v265
    %v573 = vunpack.c.l.bf16 %v266
    %v574 = vunpack.c.h.bf16 %v266
    %v575 = vunpack.c.l.bf16 %v267
    %v576 = vunpack.c.h.bf16 %v267
    %v577 = vunpack.c.l.bf16 %v268
    %v578 = vunpack.c.h.bf16 %v268
    %v579 = vunpack.c.l.bf16 %v269
    %v580 = vunpack.c.h.bf16 %v269
    %v581 = vunpack.c.l.bf16 %v270
    %v582 = vunpack.c.h.bf16 %v270
    %v583 = vunpack.c.l.bf16 %v271
    %v584 = vunpack.c.h.bf16 %v271
    %v585 = vunpack.c.l.bf16 %v272
    %v586 = vunpack.c.h.bf16 %v272
    %v587 = vunpack.c.l.bf16 %v273
    %v588 = vunpack.c.h.bf16 %v273
    %v589 = vunpack.c.l.bf16 %v274
    %v590 = vunpack.c.h.bf16 %v274
    %v591 = vunpack.c.l.bf16 %v275
    %v592 = vunpack.c.h.bf16 %v275
    %v593 = vunpack.c.l.bf16 %v276
    %v594 = vunpack.c.h.bf16 %v276
    %v595 = vunpack.c.l.bf16 %v277
    %v596 = vunpack.c.h.bf16 %v277
    %v597 = vunpack.c.l.bf16 %v278
    %v598 = vunpack.c.h.bf16 %v278
    %v599 = vunpack.c.l.bf16 %v279
    %v600 = vunpack.c.h.bf16 %v279
    %v601 = vunpack.c.l.bf16 %v280
    %v602 = vunpack.c.h.bf16 %v280
    %v603 = vunpack.c.l.bf16 %v281
    %v604 = vunpack.c.h.bf16 %v281
    %v605 = vunpack.c.l.bf16 %v282
    %v606 = vunpack.c.h.bf16 %v282
    %v607 = vunpack.c.l.bf16 %v283
    %v608 = vunpack.c.h.bf16 %v283
    %v609 = vunpack.c.l.bf16 %v284
    %v610 = vunpack.c.h.bf16 %v284
    %v611 = vunpack.c.l.bf16 %v285
    %v612 = vunpack.c.h.bf16 %v285
    %v613 = vunpack.c.l.bf16 %v286
    %v614 = vunpack.c.h.bf16 %v286
    %v615 = vunpack.c.l.bf16 %v287
    %v616 = vunpack.c.h.bf16 %v287
    %v617 = vunpack.c.l.bf16 %v288
    %v618 = vunpack.c.h.bf16 %v288
    %v619 = vunpack.c.l.bf16 %v289
    %v620 = vunpack.c.h.bf16 %v289
    %v621 = vunpack.c.l.bf16 %v290
    %v622 = vunpack.c.h.bf16 %v290
    %v623 = vunpack.c.l.bf16 %v291
    %v624 = vunpack.c.h.bf16 %v291
    %v625 = vunpack.c.l.bf16 %v292
    %v626 = vunpack.c.h.bf16 %v292
    %v627 = vunpack.c.l.bf16 %v293
    %v628 = vunpack.c.h.bf16 %v293
    %v629 = vunpack.c.l.bf16 %v294
    %v630 = vunpack.c.h.bf16 %v294
    %v631 = vunpack.c.l.bf16 %v295
    %v632 = vunpack.c.h.bf16 %v295
    %v633 = vunpack.c.l.bf16 %v296
    %v634 = vunpack.c.h.bf16 %v296
    %v635 = vunpack.c.l.bf16 %v297
    %v636 = vunpack.c.h.bf16 %v297
    %v637 = vunpack.c.l.bf16 %v298
    %v638 = vunpack.c.h.bf16 %v298
    %v639 = vunpack.c.l.bf16 %v299
    %v640 = vunpack.c.h.bf16 %v299
    %v641 = vunpack.c.l.bf16 %v300
    %v642 = vunpack.c.h.bf16 %v300
    %v643 = vunpack.c.l.bf16 %v301
    %v644 = vunpack.c.h.bf16 %v301
    %v645 = vunpack.c.l.bf16 %v302
    %v646 = vunpack.c.h.bf16 %v302
    %v647 = vunpack.c.l.bf16 %v303
    %v648 = vunpack.c.h.bf16 %v303
    %v649 = vunpack.c.l.bf16 %v304
    %v650 = vunpack.c.h.bf16 %v304
    %v651 = vunpack.c.l.bf16 %v305
    %v652 = vunpack.c.h.bf16 %v305
    %v653 = vunpack.c.l.bf16 %v306
    %v654 = vunpack.c.h.bf16 %v306
    %v655 = vunpack.c.l.bf16 %v307
    %v656 = vunpack.c.h.bf16 %v307
    %v657 = vunpack.c.l.bf16 %v308
    %v658 = vunpack.c.h.bf16 %v308
    %v659 = vunpack.c.l.bf16 %v309
    %v660 = vunpack.c.h.bf16 %v309
    %v661 = vunpack.c.l.bf16 %v310
    %v662 = vunpack.c.h.bf16 %v310
    %v663 = vunpack.c.l.bf16 %v311
    %v664 = vunpack.c.h.bf16 %v311
    %v665 = vunpack.c.l.bf16 %v312
    %v666 = vunpack.c.h.bf16 %v312
    %v667 = vunpack.c.l.bf16 %v313
    %v668 = vunpack.c.h.bf16 %v313
    %v669 = vunpack.c.l.bf16 %v314
    %v670 = vunpack.c.h.bf16 %v314
    %v671 = vunpack.c.l.bf16 %v315
    %v672 = vunpack.c.h.bf16 %v315
    %v673 = vunpack.c.l.bf16 %v316
    %v674 = vunpack.c.h.bf16 %v316
    %v675 = vunpack.c.l.bf16 %v317
    %v676 = vunpack.c.h.bf16 %v317
    %v677 = vunpack.c.l.bf16 %v318
    %v678 = vunpack.c.h.bf16 %v318
    %v679 = vunpack.c.l.bf16 %v319
    %v680 = vunpack.c.h.bf16 %v319
    %v681 = vunpack.c.l.bf16 %v320
    %v682 = vunpack.c.h.bf16 %v320
    %v683 = vunpack.c.l.bf16 %v321
    %v684 = vunpack.c.h.bf16 %v321
    %v685 = vunpack.c.l.bf16 %v322
    %v686 = vunpack.c.h.bf16 %v322
    %v687 = vunpack.c.l.bf16 %v323
    %v688 = vunpack.c.h.bf16 %v323
    %v689 = vunpack.c.l.bf16 %v324
    %v690 = vunpack.c.h.bf16 %v324
    %v691 = vunpack.c.l.bf16 %v325
    %v692 = vunpack.c.h.bf16 %v325
    %v693 = vunpack.c.l.bf16 %v326
    %v694 = vunpack.c.h.bf16 %v326
    %v695 = vunpack.c.l.bf16 %v327
    %v696 = vunpack.c.h.bf16 %v327
    %v697 = vunpack.c.l.bf16 %v328
    %v698 = vunpack.c.h.bf16 %v328
    %v699 = vunpack.c.l.bf16 %v329
    %v700 = vunpack.c.h.bf16 %v329
    %v701 = vunpack.c.l.bf16 %v330
    %v702 = vunpack.c.h.bf16 %v330
    %v703 = vunpack.c.l.bf16 %v331
    %v704 = vunpack.c.h.bf16 %v331
    %v705 = vunpack.c.l.bf16 %v332
    %v706 = vunpack.c.h.bf16 %v332
    %v707 = vunpack.c.l.bf16 %v333
    %v708 = vunpack.c.h.bf16 %v333
    %v709 = vunpack.c.l.bf16 %v334
    %v710 = vunpack.c.h.bf16 %v334
    %v711 = vunpack.c.l.bf16 %v335
    %v712 = vunpack.c.h.bf16 %v335
    %v713 = vunpack.c.l.bf16 %v336
    %v714 = vunpack.c.h.bf16 %v336
    %v715 = vunpack.c.l.bf16 %v337
    %v716 = vunpack.c.h.bf16 %v337
    %v717 = vunpack.c.l.bf16 %v338
    %v718 = vunpack.c.h.bf16 %v338
    %v719 = vunpack.c.l.bf16 %v339
    %v720 = vunpack.c.h.bf16 %v339
    %v721 = vunpack.c.l.bf16 %v340
    %v722 = vunpack.c.h.bf16 %v340
    %v723 = vunpack.c.l.bf16 %v341
    %v724 = vunpack.c.h.bf16 %v341
    %v725 = vunpack.c.l.bf16 %v342
    %v726 = vunpack.c.h.bf16 %v342
    %v727 = vld [vmem:[%s2] sm:$0xf]
    %v729 = vperm.slane %v727, 0
    %v730 = vperm.slane %v727, 1
    %v731 = vperm.slane %v727, 2
    %v732 = vperm.slane %v727, 3
    %739 = vst [vmem:[#allocation1] ss:$4 sm:$0xff] %v149
    %s740 = scalar_lea.vmem [#allocation1], 32
    %741 = vst [vmem:[%s740] ss:$4 sm:$0xff] %v150
    %v742 = vld.sshfl [vmem:[#allocation1] sm:$0xff pattern:$0x73625140]
    %v743 = vld.sshfl [vmem:[#allocation1 + $0x8] sm:$0xff pattern:$0x73625140]
    %v744 = vld.sshfl [vmem:[#allocation1 + $0x10] sm:$0xff pattern:$0x73625140]
    %v745 = vld.sshfl [vmem:[#allocation1 + $0x18] sm:$0xff pattern:$0x73625140]
    %v746 = vld.sshfl [vmem:[#allocation1 + $0x20] sm:$0xff pattern:$0x73625140]
    %v747 = vld.sshfl [vmem:[#allocation1 + $0x28] sm:$0xff pattern:$0x73625140]
    %754 = vmatpush.msra.mxu0 %v403
    %755 = vmatpush.msra.mxu0 %v399
    %756 = vmatpush.msra.mxu0 %v395
    %757 = vmatpush.msra.mxu0 %v391
    %758 = vmatpush.msra.mxu0 %v387
    %759 = vmatpush.msra.mxu0 %v383
    %760 = vmatpush.msra.mxu0 %v379
    %761 = vmatpush.msra.mxu0 %v375
    %762 = vmatpush.msra.mxu0 %v371
    %763 = vmatpush.msra.mxu0 %v367
    %764 = vmatpush.msra.mxu0 %v363
    %765 = vmatpush.msra.mxu0 %v359
    %766 = vmatpush.msra.mxu0 %v355
    %767 = vmatpush.msra.mxu0 %v351
    %768 = vmatpush.msra.mxu0 %v347
    %769 = vmatpush.msra.mxu0 %v343
    %770 = vmatmul.f32.gmra.mxu0 %v742
    %v771 = vpop.f32.mrf.mxu0
    %v772 = vadd.f32 %v729, %v771
    %773 = vdwg.mxu0
    %774 = vmatpush.msra.mxu0 %v467
    %775 = vmatpush.msra.mxu0 %v463
    %776 = vmatpush.msra.mxu0 %v459
    %777 = vmatpush.msra.mxu0 %v455
    %778 = vmatpush.msra.mxu0 %v451
    %779 = vmatpush.msra.mxu0 %v447
    %780 = vmatpush.msra.mxu0 %v443
    %781 = vmatpush.msra.mxu0 %v439
    %782 = vmatpush.msra.mxu0 %v435
    %783 = vmatpush.msra.mxu0 %v431
    %784 = vmatpush.msra.mxu0 %v427
    %785 = vmatpush.msra.mxu0 %v423
    %786 = vmatpush.msra.mxu0 %v419
    %787 = vmatpush.msra.mxu0 %v415
    %788 = vmatpush.msra.mxu0 %v411
    %789 = vmatpush.msra.mxu0 %v407
    %790 = vmatmul.f32.gmra.mxu0 %v743
    %v791 = vpop.f32.mrf.mxu0
    %v792 = vadd.f32 %v772, %v791
    %793 = vdwg.mxu0
    %794 = vmatpush.msra.mxu0 %v531
    %795 = vmatpush.msra.mxu0 %v527
    %796 = vmatpush.msra.mxu0 %v523
    %797 = vmatpush.msra.mxu0 %v519
    %798 = vmatpush.msra.mxu0 %v515
    %799 = vmatpush.msra.mxu0 %v511
    %800 = vmatpush.msra.mxu0 %v507
    %801 = vmatpush.msra.mxu0 %v503
    %802 = vmatpush.msra.mxu0 %v499
    %803 = vmatpush.msra.mxu0 %v495
    %804 = vmatpush.msra.mxu0 %v491
    %805 = vmatpush.msra.mxu0 %v487
    %806 = vmatpush.msra.mxu0 %v483
    %807 = vmatpush.msra.mxu0 %v479
    %808 = vmatpush.msra.mxu0 %v475
    %809 = vmatpush.msra.mxu0 %v471
    %810 = vmatmul.f32.gmra.mxu0 %v744
    %v811 = vpop.f32.mrf.mxu0
    %v812 = vadd.f32 %v792, %v811
    %813 = vdwg.mxu0
    %814 = vmatpush.msra.mxu0 %v595
    %815 = vmatpush.msra.mxu0 %v591
    %816 = vmatpush.msra.mxu0 %v587
    %817 = vmatpush.msra.mxu0 %v583
    %818 = vmatpush.msra.mxu0 %v579
    %819 = vmatpush.msra.mxu0 %v575
    %820 = vmatpush.msra.mxu0 %v571
    %821 = vmatpush.msra.mxu0 %v567
    %822 = vmatpush.msra.mxu0 %v563
    %823 = vmatpush.msra.mxu0 %v559
    %824 = vmatpush.msra.mxu0 %v555
    %825 = vmatpush.msra.mxu0 %v551
    %826 = vmatpush.msra.mxu0 %v547
    %827 = vmatpush.msra.mxu0 %v543
    %828 = vmatpush.msra.mxu0 %v539
    %829 = vmatpush.msra.mxu0 %v535
    %830 = vmatmul.f32.gmra.mxu0 %v745
    %v831 = vpop.f32.mrf.mxu0
    %v832 = vadd.f32 %v812, %v831
    %833 = vdwg.mxu0
    %834 = vmatpush.msra.mxu0 %v659
    %835 = vmatpush.msra.mxu0 %v655
    %836 = vmatpush.msra.mxu0 %v651
    %837 = vmatpush.msra.mxu0 %v647
    %838 = vmatpush.msra.mxu0 %v643
    %839 = vmatpush.msra.mxu0 %v639
    %840 = vmatpush.msra.mxu0 %v635
    %841 = vmatpush.msra.mxu0 %v631
    %842 = vmatpush.msra.mxu0 %v627
    %843 = vmatpush.msra.mxu0 %v623
    %844 = vmatpush.msra.mxu0 %v619
    %845 = vmatpush.msra.mxu0 %v615
    %846 = vmatpush.msra.mxu0 %v611
    %847 = vmatpush.msra.mxu0 %v607
    %848 = vmatpush.msra.mxu0 %v603
    %849 = vmatpush.msra.mxu0 %v599
    %850 = vmatmul.f32.gmra.mxu0 %v746
    %v851 = vpop.f32.mrf.mxu0
    %v852 = vadd.f32 %v832, %v851
    %853 = vdwg.mxu0
    %854 = vmatpush.msra.mxu0 %v723
    %855 = vmatpush.msra.mxu0 %v719
    %856 = vmatpush.msra.mxu0 %v715
    %857 = vmatpush.msra.mxu0 %v711
    %858 = vmatpush.msra.mxu0 %v707
    %859 = vmatpush.msra.mxu0 %v703
    %860 = vmatpush.msra.mxu0 %v699
    %861 = vmatpush.msra.mxu0 %v695
    %862 = vmatpush.msra.mxu0 %v691
    %863 = vmatpush.msra.mxu0 %v687
    %864 = vmatpush.msra.mxu0 %v683
    %865 = vmatpush.msra.mxu0 %v679
    %866 = vmatpush.msra.mxu0 %v675
    %867 = vmatpush.msra.mxu0 %v671
    %868 = vmatpush.msra.mxu0 %v667
    %869 = vmatpush.msra.mxu0 %v663
    %870 = vmatmul.f32.gmra.mxu0 %v747
    %v871 = vpop.f32.mrf.mxu0
    %v872 = vadd.f32 %v852, %v871
    %873 = vdwg.mxu0
    %874 = vmatpush.msra.mxu0 %v404
    %875 = vmatpush.msra.mxu0 %v400
    %876 = vmatpush.msra.mxu0 %v396
    %877 = vmatpush.msra.mxu0 %v392
    %878 = vmatpush.msra.mxu0 %v388
    %879 = vmatpush.msra.mxu0 %v384
    %880 = vmatpush.msra.mxu0 %v380
    %881 = vmatpush.msra.mxu0 %v376
    %882 = vmatpush.msra.mxu0 %v372
    %883 = vmatpush.msra.mxu0 %v368
    %884 = vmatpush.msra.mxu0 %v364
    %885 = vmatpush.msra.mxu0 %v360
    %886 = vmatpush.msra.mxu0 %v356
    %887 = vmatpush.msra.mxu0 %v352
    %888 = vmatpush.msra.mxu0 %v348
    %889 = vmatpush.msra.mxu0 %v344
    %890 = vmatmul.f32.gmra.mxu0 %v742
    %v891 = vpop.f32.mrf.mxu0
    %v892 = vadd.f32 %v730, %v891
    %893 = vdwg.mxu0
    %894 = vmatpush.msra.mxu0 %v468
    %895 = vmatpush.msra.mxu0 %v464
    %896 = vmatpush.msra.mxu0 %v460
    %897 = vmatpush.msra.mxu0 %v456
    %898 = vmatpush.msra.mxu0 %v452
    %899 = vmatpush.msra.mxu0 %v448
    %900 = vmatpush.msra.mxu0 %v444
    %901 = vmatpush.msra.mxu0 %v440
    %902 = vmatpush.msra.mxu0 %v436
    %903 = vmatpush.msra.mxu0 %v432
    %904 = vmatpush.msra.mxu0 %v428
    %905 = vmatpush.msra.mxu0 %v424
    %906 = vmatpush.msra.mxu0 %v420
    %907 = vmatpush.msra.mxu0 %v416
    %908 = vmatpush.msra.mxu0 %v412
    %909 = vmatpush.msra.mxu0 %v408
    %910 = vmatmul.f32.gmra.mxu0 %v743
    %v911 = vpop.f32.mrf.mxu0
    %v912 = vadd.f32 %v892, %v911
    %913 = vdwg.mxu0
    %914 = vmatpush.msra.mxu0 %v532
    %915 = vmatpush.msra.mxu0 %v528
    %916 = vmatpush.msra.mxu0 %v524
    %917 = vmatpush.msra.mxu0 %v520
    %918 = vmatpush.msra.mxu0 %v516
    %919 = vmatpush.msra.mxu0 %v512
    %920 = vmatpush.msra.mxu0 %v508
    %921 = vmatpush.msra.mxu0 %v504
    %922 = vmatpush.msra.mxu0 %v500
    %923 = vmatpush.msra.mxu0 %v496
    %924 = vmatpush.msra.mxu0 %v492
    %925 = vmatpush.msra.mxu0 %v488
    %926 = vmatpush.msra.mxu0 %v484
    %927 = vmatpush.msra.mxu0 %v480
    %928 = vmatpush.msra.mxu0 %v476
    %929 = vmatpush.msra.mxu0 %v472
    %930 = vmatmul.f32.gmra.mxu0 %v744
    %v931 = vpop.f32.mrf.mxu0
    %v932 = vadd.f32 %v912, %v931
    %933 = vdwg.mxu0
    %934 = vmatpush.msra.mxu0 %v596
    %935 = vmatpush.msra.mxu0 %v592
    %936 = vmatpush.msra.mxu0 %v588
    %937 = vmatpush.msra.mxu0 %v584
    %938 = vmatpush.msra.mxu0 %v580
    %939 = vmatpush.msra.mxu0 %v576
    %940 = vmatpush.msra.mxu0 %v572
    %941 = vmatpush.msra.mxu0 %v568
    %942 = vmatpush.msra.mxu0 %v564
    %943 = vmatpush.msra.mxu0 %v560
    %944 = vmatpush.msra.mxu0 %v556
    %945 = vmatpush.msra.mxu0 %v552
    %946 = vmatpush.msra.mxu0 %v548
    %947 = vmatpush.msra.mxu0 %v544
    %948 = vmatpush.msra.mxu0 %v540
    %949 = vmatpush.msra.mxu0 %v536
    %950 = vmatmul.f32.gmra.mxu0 %v745
    %v951 = vpop.f32.mrf.mxu0
    %v952 = vadd.f32 %v932, %v951
    %953 = vdwg.mxu0
    %954 = vmatpush.msra.mxu0 %v660
    %955 = vmatpush.msra.mxu0 %v656
    %956 = vmatpush.msra.mxu0 %v652
    %957 = vmatpush.msra.mxu0 %v648
    %958 = vmatpush.msra.mxu0 %v644
    %959 = vmatpush.msra.mxu0 %v640
    %960 = vmatpush.msra.mxu0 %v636
    %961 = vmatpush.msra.mxu0 %v632
    %962 = vmatpush.msra.mxu0 %v628
    %963 = vmatpush.msra.mxu0 %v624
    %964 = vmatpush.msra.mxu0 %v620
    %965 = vmatpush.msra.mxu0 %v616
    %966 = vmatpush.msra.mxu0 %v612
    %967 = vmatpush.msra.mxu0 %v608
    %968 = vmatpush.msra.mxu0 %v604
    %969 = vmatpush.msra.mxu0 %v600
    %970 = vmatmul.f32.gmra.mxu0 %v746
    %v971 = vpop.f32.mrf.mxu0
    %v972 = vadd.f32 %v952, %v971
    %973 = vdwg.mxu0
    %974 = vmatpush.msra.mxu0 %v724
    %975 = vmatpush.msra.mxu0 %v720
    %976 = vmatpush.msra.mxu0 %v716
    %977 = vmatpush.msra.mxu0 %v712
    %978 = vmatpush.msra.mxu0 %v708
    %979 = vmatpush.msra.mxu0 %v704
    %980 = vmatpush.msra.mxu0 %v700
    %981 = vmatpush.msra.mxu0 %v696
    %982 = vmatpush.msra.mxu0 %v692
    %983 = vmatpush.msra.mxu0 %v688
    %984 = vmatpush.msra.mxu0 %v684
    %985 = vmatpush.msra.mxu0 %v680
    %986 = vmatpush.msra.mxu0 %v676
    %987 = vmatpush.msra.mxu0 %v672
    %988 = vmatpush.msra.mxu0 %v668
    %989 = vmatpush.msra.mxu0 %v664
    %990 = vmatmul.f32.gmra.mxu0 %v747
    %v991 = vpop.f32.mrf.mxu0
    %v992 = vadd.f32 %v972, %v991
    %993 = vdwg.mxu0
    %994 = vmatpush.msra.mxu0 %v405
    %995 = vmatpush.msra.mxu0 %v401
    %996 = vmatpush.msra.mxu0 %v397
    %997 = vmatpush.msra.mxu0 %v393
    %998 = vmatpush.msra.mxu0 %v389
    %999 = vmatpush.msra.mxu0 %v385
    %1000 = vmatpush.msra.mxu0 %v381
    %1001 = vmatpush.msra.mxu0 %v377
    %1002 = vmatpush.msra.mxu0 %v373
    %1003 = vmatpush.msra.mxu0 %v369
    %1004 = vmatpush.msra.mxu0 %v365
    %1005 = vmatpush.msra.mxu0 %v361
    %1006 = vmatpush.msra.mxu0 %v357
    %1007 = vmatpush.msra.mxu0 %v353
    %1008 = vmatpush.msra.mxu0 %v349
    %1009 = vmatpush.msra.mxu0 %v345
    %1010 = vmatmul.f32.gmra.mxu0 %v742
    %v1011 = vpop.f32.mrf.mxu0
    %v1012 = vadd.f32 %v731, %v1011
    %1013 = vdwg.mxu0
    %1014 = vmatpush.msra.mxu0 %v469
    %1015 = vmatpush.msra.mxu0 %v465
    %1016 = vmatpush.msra.mxu0 %v461
    %1017 = vmatpush.msra.mxu0 %v457
    %1018 = vmatpush.msra.mxu0 %v453
    %1019 = vmatpush.msra.mxu0 %v449
    %1020 = vmatpush.msra.mxu0 %v445
    %1021 = vmatpush.msra.mxu0 %v441
    %1022 = vmatpush.msra.mxu0 %v437
    %1023 = vmatpush.msra.mxu0 %v433
    %1024 = vmatpush.msra.mxu0 %v429
    %1025 = vmatpush.msra.mxu0 %v425
    %1026 = vmatpush.msra.mxu0 %v421
    %1027 = vmatpush.msra.mxu0 %v417
    %1028 = vmatpush.msra.mxu0 %v413
    %1029 = vmatpush.msra.mxu0 %v409
    %1030 = vmatmul.f32.gmra.mxu0 %v743
    %v1031 = vpop.f32.mrf.mxu0
    %v1032 = vadd.f32 %v1012, %v1031
    %1033 = vdwg.mxu0
    %1034 = vmatpush.msra.mxu0 %v533
    %1035 = vmatpush.msra.mxu0 %v529
    %1036 = vmatpush.msra.mxu0 %v525
    %1037 = vmatpush.msra.mxu0 %v521
    %1038 = vmatpush.msra.mxu0 %v517
    %1039 = vmatpush.msra.mxu0 %v513
    %1040 = vmatpush.msra.mxu0 %v509
    %1041 = vmatpush.msra.mxu0 %v505
    %1042 = vmatpush.msra.mxu0 %v501
    %1043 = vmatpush.msra.mxu0 %v497
    %1044 = vmatpush.msra.mxu0 %v493
    %1045 = vmatpush.msra.mxu0 %v489
    %1046 = vmatpush.msra.mxu0 %v485
    %1047 = vmatpush.msra.mxu0 %v481
    %1048 = vmatpush.msra.mxu0 %v477
    %1049 = vmatpush.msra.mxu0 %v473
    %1050 = vmatmul.f32.gmra.mxu0 %v744
    %v1051 = vpop.f32.mrf.mxu0
    %v1052 = vadd.f32 %v1032, %v1051
    %1053 = vdwg.mxu0
    %1054 = vmatpush.msra.mxu0 %v597
    %1055 = vmatpush.msra.mxu0 %v593
    %1056 = vmatpush.msra.mxu0 %v589
    %1057 = vmatpush.msra.mxu0 %v585
    %1058 = vmatpush.msra.mxu0 %v581
    %1059 = vmatpush.msra.mxu0 %v577
    %1060 = vmatpush.msra.mxu0 %v573
    %1061 = vmatpush.msra.mxu0 %v569
    %1062 = vmatpush.msra.mxu0 %v565
    %1063 = vmatpush.msra.mxu0 %v561
    %1064 = vmatpush.msra.mxu0 %v557
    %1065 = vmatpush.msra.mxu0 %v553
    %1066 = vmatpush.msra.mxu0 %v549
    %1067 = vmatpush.msra.mxu0 %v545
    %1068 = vmatpush.msra.mxu0 %v541
    %1069 = vmatpush.msra.mxu0 %v537
    %1070 = vmatmul.f32.gmra.mxu0 %v745
    %v1071 = vpop.f32.mrf.mxu0
    %v1072 = vadd.f32 %v1052, %v1071
    %1073 = vdwg.mxu0
    %1074 = vmatpush.msra.mxu0 %v661
    %1075 = vmatpush.msra.mxu0 %v657
    %1076 = vmatpush.msra.mxu0 %v653
    %1077 = vmatpush.msra.mxu0 %v649
    %1078 = vmatpush.msra.mxu0 %v645
    %1079 = vmatpush.msra.mxu0 %v641
    %1080 = vmatpush.msra.mxu0 %v637
    %1081 = vmatpush.msra.mxu0 %v633
    %1082 = vmatpush.msra.mxu0 %v629
    %1083 = vmatpush.msra.mxu0 %v625
    %1084 = vmatpush.msra.mxu0 %v621
    %1085 = vmatpush.msra.mxu0 %v617
    %1086 = vmatpush.msra.mxu0 %v613
    %1087 = vmatpush.msra.mxu0 %v609
    %1088 = vmatpush.msra.mxu0 %v605
    %1089 = vmatpush.msra.mxu0 %v601
    %1090 = vmatmul.f32.gmra.mxu0 %v746
    %v1091 = vpop.f32.mrf.mxu0
    %v1092 = vadd.f32 %v1072, %v1091
    %1093 = vdwg.mxu0
    %1094 = vmatpush.msra.mxu0 %v725
    %1095 = vmatpush.msra.mxu0 %v721
    %1096 = vmatpush.msra.mxu0 %v717
    %1097 = vmatpush.msra.mxu0 %v713
    %1098 = vmatpush.msra.mxu0 %v709
    %1099 = vmatpush.msra.mxu0 %v705
    %1100 = vmatpush.msra.mxu0 %v701
    %1101 = vmatpush.msra.mxu0 %v697
    %1102 = vmatpush.msra.mxu0 %v693
    %1103 = vmatpush.msra.mxu0 %v689
    %1104 = vmatpush.msra.mxu0 %v685
    %1105 = vmatpush.msra.mxu0 %v681
    %1106 = vmatpush.msra.mxu0 %v677
    %1107 = vmatpush.msra.mxu0 %v673
    %1108 = vmatpush.msra.mxu0 %v669
    %1109 = vmatpush.msra.mxu0 %v665
    %1110 = vmatmul.f32.gmra.mxu0 %v747
    %v1111 = vpop.f32.mrf.mxu0
    %v1112 = vadd.f32 %v1092, %v1111
    %1113 = vdwg.mxu0
    %1114 = vmatpush.msra.mxu0 %v406
    %1115 = vmatpush.msra.mxu0 %v402
    %1116 = vmatpush.msra.mxu0 %v398
    %1117 = vmatpush.msra.mxu0 %v394
    %1118 = vmatpush.msra.mxu0 %v390
    %1119 = vmatpush.msra.mxu0 %v386
    %1120 = vmatpush.msra.mxu0 %v382
    %1121 = vmatpush.msra.mxu0 %v378
    %1122 = vmatpush.msra.mxu0 %v374
    %1123 = vmatpush.msra.mxu0 %v370
    %1124 = vmatpush.msra.mxu0 %v366
    %1125 = vmatpush.msra.mxu0 %v362
    %1126 = vmatpush.msra.mxu0 %v358
    %1127 = vmatpush.msra.mxu0 %v354
    %1128 = vmatpush.msra.mxu0 %v350
    %1129 = vmatpush.msra.mxu0 %v346
    %1130 = vmatmul.f32.gmra.mxu0 %v742
    %v1131 = vpop.f32.mrf.mxu0
    %v1132 = vadd.f32 %v732, %v1131
    %1133 = vdwg.mxu0
    %1134 = vmatpush.msra.mxu0 %v470
    %1135 = vmatpush.msra.mxu0 %v466
    %1136 = vmatpush.msra.mxu0 %v462
    %1137 = vmatpush.msra.mxu0 %v458
    %1138 = vmatpush.msra.mxu0 %v454
    %1139 = vmatpush.msra.mxu0 %v450
    %1140 = vmatpush.msra.mxu0 %v446
    %1141 = vmatpush.msra.mxu0 %v442
    %1142 = vmatpush.msra.mxu0 %v438
    %1143 = vmatpush.msra.mxu0 %v434
    %1144 = vmatpush.msra.mxu0 %v430
    %1145 = vmatpush.msra.mxu0 %v426
    %1146 = vmatpush.msra.mxu0 %v422
    %1147 = vmatpush.msra.mxu0 %v418
    %1148 = vmatpush.msra.mxu0 %v414
    %1149 = vmatpush.msra.mxu0 %v410
    %1150 = vmatmul.f32.gmra.mxu0 %v743
    %v1151 = vpop.f32.mrf.mxu0
    %v1152 = vadd.f32 %v1132, %v1151
    %1153 = vdwg.mxu0
    %1154 = vmatpush.msra.mxu0 %v534
    %1155 = vmatpush.msra.mxu0 %v530
    %1156 = vmatpush.msra.mxu0 %v526
    %1157 = vmatpush.msra.mxu0 %v522
    %1158 = vmatpush.msra.mxu0 %v518
    %1159 = vmatpush.msra.mxu0 %v514
    %1160 = vmatpush.msra.mxu0 %v510
    %1161 = vmatpush.msra.mxu0 %v506
    %1162 = vmatpush.msra.mxu0 %v502
    %1163 = vmatpush.msra.mxu0 %v498
    %1164 = vmatpush.msra.mxu0 %v494
    %1165 = vmatpush.msra.mxu0 %v490
    %1166 = vmatpush.msra.mxu0 %v486
    %1167 = vmatpush.msra.mxu0 %v482
    %1168 = vmatpush.msra.mxu0 %v478
    %1169 = vmatpush.msra.mxu0 %v474
    %1170 = vmatmul.f32.gmra.mxu0 %v744
    %v1171 = vpop.f32.mrf.mxu0
    %v1172 = vadd.f32 %v1152, %v1171
    %1173 = vdwg.mxu0
    %1174 = vmatpush.msra.mxu0 %v598
    %1175 = vmatpush.msra.mxu0 %v594
    %1176 = vmatpush.msra.mxu0 %v590
    %1177 = vmatpush.msra.mxu0 %v586
    %1178 = vmatpush.msra.mxu0 %v582
    %1179 = vmatpush.msra.mxu0 %v578
    %1180 = vmatpush.msra.mxu0 %v574
    %1181 = vmatpush.msra.mxu0 %v570
    %1182 = vmatpush.msra.mxu0 %v566
    %1183 = vmatpush.msra.mxu0 %v562
    %1184 = vmatpush.msra.mxu0 %v558
    %1185 = vmatpush.msra.mxu0 %v554
    %1186 = vmatpush.msra.mxu0 %v550
    %1187 = vmatpush.msra.mxu0 %v546
    %1188 = vmatpush.msra.mxu0 %v542
    %1189 = vmatpush.msra.mxu0 %v538
    %1190 = vmatmul.f32.gmra.mxu0 %v745
    %v1191 = vpop.f32.mrf.mxu0
    %v1192 = vadd.f32 %v1172, %v1191
    %1193 = vdwg.mxu0
    %1194 = vmatpush.msra.mxu0 %v662
    %1195 = vmatpush.msra.mxu0 %v658
    %1196 = vmatpush.msra.mxu0 %v654
    %1197 = vmatpush.msra.mxu0 %v650
    %1198 = vmatpush.msra.mxu0 %v646
    %1199 = vmatpush.msra.mxu0 %v642
    %1200 = vmatpush.msra.mxu0 %v638
    %1201 = vmatpush.msra.mxu0 %v634
    %1202 = vmatpush.msra.mxu0 %v630
    %1203 = vmatpush.msra.mxu0 %v626
    %1204 = vmatpush.msra.mxu0 %v622
    %1205 = vmatpush.msra.mxu0 %v618
    %1206 = vmatpush.msra.mxu0 %v614
    %1207 = vmatpush.msra.mxu0 %v610
    %1208 = vmatpush.msra.mxu0 %v606
    %1209 = vmatpush.msra.mxu0 %v602
    %1210 = vmatmul.f32.gmra.mxu0 %v746
    %v1211 = vpop.f32.mrf.mxu0
    %v1212 = vadd.f32 %v1192, %v1211
    %1213 = vdwg.mxu0
    %1214 = vmatpush.msra.mxu0 %v726
    %1215 = vmatpush.msra.mxu0 %v722
    %1216 = vmatpush.msra.mxu0 %v718
    %1217 = vmatpush.msra.mxu0 %v714
    %1218 = vmatpush.msra.mxu0 %v710
    %1219 = vmatpush.msra.mxu0 %v706
    %1220 = vmatpush.msra.mxu0 %v702
    %1221 = vmatpush.msra.mxu0 %v698
    %1222 = vmatpush.msra.mxu0 %v694
    %1223 = vmatpush.msra.mxu0 %v690
    %1224 = vmatpush.msra.mxu0 %v686
    %1225 = vmatpush.msra.mxu0 %v682
    %1226 = vmatpush.msra.mxu0 %v678
    %1227 = vmatpush.msra.mxu0 %v674
    %1228 = vmatpush.msra.mxu0 %v670
    %1229 = vmatpush.msra.mxu0 %v666
    %1230 = vmatmul.f32.gmra.mxu0 %v747
    %v1231 = vpop.f32.mrf.mxu0
    %v1232 = vadd.f32 %v1212, %v1231
    %1233 = vdwg.mxu0
    %v1234 = vmul.f32 %v872, 0.2
    %v1235 = vmul.f32 %v992, 0.2
    %v1236 = vmul.f32 %v1112, 0.2
    %v1237 = vmul.f32 %v1232, 0.2
    %v1238 = vmax.f32 %v872, %v1234
    %v1239 = vmax.f32 %v992, %v1235
    %v1240 = vmax.f32 %v1112, %v1236
    %v1241 = vmax.f32 %v1232, %v1237
    %vm1242 = vcmask 1041408
    %v1243 = vsel %vm1242, %v1238, 0.0
    %v1244 = vrot.slane %v1243, 4
    %v1245 = vadd.f32 %v1243, %v1244
    %v1246 = vrot.slane %v1245, 2
    %v1247 = vadd.f32 %v1245, %v1246
    %v1248 = vrot.slane %v1247, 1
    %v1249 = vadd.f32 %v1247, %v1248
    %v1250 = vsel %vm1242, %v1239, 0.0
    %v1251 = vrot.slane %v1250, 4
    %v1252 = vadd.f32 %v1250, %v1251
    %v1253 = vrot.slane %v1252, 2
    %v1254 = vadd.f32 %v1252, %v1253
    %v1255 = vrot.slane %v1254, 1
    %v1256 = vadd.f32 %v1254, %v1255
    %v1257 = vsel %vm1242, %v1240, 0.0
    %v1258 = vrot.slane %v1257, 4
    %v1259 = vadd.f32 %v1257, %v1258
    %v1260 = vrot.slane %v1259, 2
    %v1261 = vadd.f32 %v1259, %v1260
    %v1262 = vrot.slane %v1261, 1
    %v1263 = vadd.f32 %v1261, %v1262
    %v1264 = vsel %vm1242, %v1241, 0.0
    %v1265 = vrot.slane %v1264, 4
    %v1266 = vadd.f32 %v1264, %v1265
    %v1267 = vrot.slane %v1266, 2
    %v1268 = vadd.f32 %v1266, %v1267
    %v1269 = vrot.slane %v1268, 1
    %v1270 = vadd.f32 %v1268, %v1269
    %v1271 = vmul.f32 %v1238, %v1238
    %v1272 = vmul.f32 %v1239, %v1239
    %v1273 = vmul.f32 %v1240, %v1240
    %v1274 = vmul.f32 %v1241, %v1241
    %v1275 = vsel %vm1242, %v1271, 0.0
    %v1276 = vrot.slane %v1275, 4
    %v1277 = vadd.f32 %v1275, %v1276
    %v1278 = vrot.slane %v1277, 2
    %v1279 = vadd.f32 %v1277, %v1278
    %v1280 = vrot.slane %v1279, 1
    %v1281 = vadd.f32 %v1279, %v1280
    %v1282 = vsel %vm1242, %v1272, 0.0
    %v1283 = vrot.slane %v1282, 4
    %v1284 = vadd.f32 %v1282, %v1283
    %v1285 = vrot.slane %v1284, 2
    %v1286 = vadd.f32 %v1284, %v1285
    %v1287 = vrot.slane %v1286, 1
    %v1288 = vadd.f32 %v1286, %v1287
    %v1289 = vsel %vm1242, %v1273, 0.0
    %v1290 = vrot.slane %v1289, 4
    %v1291 = vadd.f32 %v1289, %v1290
    %v1292 = vrot.slane %v1291, 2
    %v1293 = vadd.f32 %v1291, %v1292
    %v1294 = vrot.slane %v1293, 1
    %v1295 = vadd.f32 %v1293, %v1294
    %v1296 = vsel %vm1242, %v1274, 0.0
    %v1297 = vrot.slane %v1296, 4
    %v1298 = vadd.f32 %v1296, %v1297
    %v1299 = vrot.slane %v1298, 2
    %v1300 = vadd.f32 %v1298, %v1299
    %v1301 = vrot.slane %v1300, 1
    %v1302 = vadd.f32 %v1300, %v1301
    %v1303 = vlaneseq
    %v1304 = vshrl.u32 %v1303, 7
    %vm1305 = vcmp.eq.s32.totalorder %v1304, 0
    %v1306 = vsel %vm1305, %v1249, %v1281
    %v1307 = vsel %vm1305, %v1256, %v1288
    %v1308 = vsel %vm1305, %v1263, %v1295
    %v1309 = vsel %vm1305, %v1270, %v1302
    %v1310 = vld [vmem:[#allocation5] sm:$0xff]
    %v1311 = vld [vmem:[#allocation5 + $0x8] sm:$0xff]
    %v1312 = vld [vmem:[#allocation5 + $0x10] sm:$0xff]
    %v1313 = vld [vmem:[#allocation5 + $0x18] sm:$0xff]
    %1314 = vmatpush.xpose.msra.mxu0 0.0
    %1315 = vmatpush.xpose.msra.mxu0 0.0
    %1316 = vmatpush.xpose.msra.mxu0 0.0
    %1317 = vmatpush.xpose.msra.mxu0 0.0
    %1318 = vmatpush.xpose.msra.mxu0 0.0
    %1319 = vmatpush.xpose.msra.mxu0 0.0
    %1320 = vmatpush.xpose.msra.mxu0 0.0
    %1321 = vmatpush.xpose.msra.mxu0 0.0
    %1322 = vmatpush.xpose.msra.mxu0 0.0
    %1323 = vmatpush.xpose.msra.mxu0 0.0
    %1324 = vmatpush.xpose.msra.mxu0 0.0
    %1325 = vmatpush.xpose.msra.mxu0 0.0
    %1326 = vmatpush.xpose.msra.mxu0 0.0
    %1327 = vmatpush.xpose.msra.mxu0 0.0
    %1328 = vmatpush.xpose.msra.mxu0 0.0
    %1329 = vmatpush.xpose.msra.mxu0 %v1310
    %1330 = vmatmul.f32.gmra.mxu0 %v1306
    %v1331 = vpop.f32.mrf.mxu0
    %v1332 = vadd.f32 0.0, %v1331
    %1333 = vdwg.mxu0
    %1334 = vmatpush.xpose.msra.mxu0 0.0
    %1335 = vmatpush.xpose.msra.mxu0 0.0
    %1336 = vmatpush.xpose.msra.mxu0 0.0
    %1337 = vmatpush.xpose.msra.mxu0 0.0
    %1338 = vmatpush.xpose.msra.mxu0 0.0
    %1339 = vmatpush.xpose.msra.mxu0 0.0
    %1340 = vmatpush.xpose.msra.mxu0 0.0
    %1341 = vmatpush.xpose.msra.mxu0 0.0
    %1342 = vmatpush.xpose.msra.mxu0 0.0
    %1343 = vmatpush.xpose.msra.mxu0 0.0
    %1344 = vmatpush.xpose.msra.mxu0 0.0
    %1345 = vmatpush.xpose.msra.mxu0 0.0
    %1346 = vmatpush.xpose.msra.mxu0 0.0
    %1347 = vmatpush.xpose.msra.mxu0 0.0
    %1348 = vmatpush.xpose.msra.mxu0 0.0
    %1349 = vmatpush.xpose.msra.mxu0 %v1311
    %1350 = vmatmul.f32.gmra.mxu0 %v1307
    %v1351 = vpop.f32.mrf.mxu0
    %v1352 = vadd.f32 %v1332, %v1351
    %1353 = vdwg.mxu0
    %1354 = vmatpush.xpose.msra.mxu0 0.0
    %1355 = vmatpush.xpose.msra.mxu0 0.0
    %1356 = vmatpush.xpose.msra.mxu0 0.0
    %1357 = vmatpush.xpose.msra.mxu0 0.0
    %1358 = vmatpush.xpose.msra.mxu0 0.0
    %1359 = vmatpush.xpose.msra.mxu0 0.0
    %1360 = vmatpush.xpose.msra.mxu0 0.0
    %1361 = vmatpush.xpose.msra.mxu0 0.0
    %1362 = vmatpush.xpose.msra.mxu0 0.0
    %1363 = vmatpush.xpose.msra.mxu0 0.0
    %1364 = vmatpush.xpose.msra.mxu0 0.0
    %1365 = vmatpush.xpose.msra.mxu0 0.0
    %1366 = vmatpush.xpose.msra.mxu0 0.0
    %1367 = vmatpush.xpose.msra.mxu0 0.0
    %1368 = vmatpush.xpose.msra.mxu0 0.0
    %1369 = vmatpush.xpose.msra.mxu0 %v1312
    %1370 = vmatmul.f32.gmra.mxu0 %v1308
    %v1371 = vpop.f32.mrf.mxu0
    %v1372 = vadd.f32 %v1352, %v1371
    %1373 = vdwg.mxu0
    %1374 = vmatpush.xpose.msra.mxu0 0.0
    %1375 = vmatpush.xpose.msra.mxu0 0.0
    %1376 = vmatpush.xpose.msra.mxu0 0.0
    %1377 = vmatpush.xpose.msra.mxu0 0.0
    %1378 = vmatpush.xpose.msra.mxu0 0.0
    %1379 = vmatpush.xpose.msra.mxu0 0.0
    %1380 = vmatpush.xpose.msra.mxu0 0.0
    %1381 = vmatpush.xpose.msra.mxu0 0.0
    %1382 = vmatpush.xpose.msra.mxu0 0.0
    %1383 = vmatpush.xpose.msra.mxu0 0.0
    %1384 = vmatpush.xpose.msra.mxu0 0.0
    %1385 = vmatpush.xpose.msra.mxu0 0.0
    %1386 = vmatpush.xpose.msra.mxu0 0.0
    %1387 = vmatpush.xpose.msra.mxu0 0.0
    %1388 = vmatpush.xpose.msra.mxu0 0.0
    %1389 = vmatpush.xpose.msra.mxu0 %v1313
    %1390 = vmatmul.f32.gmra.mxu0 %v1309
    %v1391 = vpop.f32.mrf.mxu0
    %v1392 = vadd.f32 %v1372, %v1391
    %1393 = vdwg.mxu0
    %v1394 = vmul.f32 %v1392, 0.0078125
    %v1395 = vmul.f32 %v1394, %v1394
    %v1397 = vrot.slane %v1395, 7
    %v1399 = vsub.f32 %v1394, %v1397
    %v1400 = vadd.f32 %v1399, 1e-05
    %v1401 = vrsqrt.pop %v1400
    %v1402 = vmul.f32 %v1401, %v1400
    %v1403 = vmul.f32 %v1402, %v1401
    %v1404 = vmul.f32 0.5, %v1403
    %v1405 = vsub.f32 1.5, %v1404
    %v1406 = vmul.f32 %v1401, %v1405
    %vm1407 = vweird.f32 %v1400
    %vm1408 = vweird.f32 %v1401
    %vm1409 = vmor %vm1407, %vm1408
    %v1410 = vsel %vm1409, %v1401, %v1406
    %v1411 = vld [vmem:[%s3] sm:$0x1]
    %v1413 = vrot.slane %v1410, 1
    %v1415 = vmul.f32 %v1411, %v1413
    %v1416 = vld [vmem:[%s3 + $0x1] sm:$0x1]
    %v1417 = vmul.f32 %v1394, %v1415
    %v1418 = vsub.f32 %v1416, %v1417
    %v1419 = vperm.slane %v1415, 0
    %v1420 = vperm.slane %v1418, 0
    %v1421 = vsel %vm1305, %v1419, %v1420
    %vm1422 = vcmask 64512
    %v1424 = vsel %vm1422, %v1421, 0
    %1426 = vmatpush.msra.mxu0 0.0
    %1427 = vmatpush.msra.mxu0 0.0
    %1428 = vmatpush.msra.mxu0 0.0
    %1429 = vmatpush.msra.mxu0 0.0
    %1430 = vmatpush.msra.mxu0 0.0
    %1431 = vmatpush.msra.mxu0 0.0
    %1432 = vmatpush.msra.mxu0 0.0
    %1433 = vmatpush.msra.mxu0 0.0
    %1434 = vmatpush.msra.mxu0 0.0
    %1435 = vmatpush.msra.mxu0 0.0
    %1436 = vmatpush.msra.mxu0 0.0
    %1437 = vmatpush.msra.mxu0 0.0
    %1438 = vmatpush.msra.mxu0 0.0
    %1439 = vmatpush.msra.mxu0 0.0
    %1440 = vmatpush.msra.mxu0 0.0
    %1441 = vmatpush.msra.mxu0 %v1310
    %1442 = vmatmul.f32.gmra.mxu0 %v1424
    %v1443 = vpop.f32.mrf.mxu0
    %v1444 = vadd.f32 0.0, %v1443
    %1445 = vdwg.mxu0
    %1446 = vmatpush.msra.mxu0 0.0
    %1447 = vmatpush.msra.mxu0 0.0
    %1448 = vmatpush.msra.mxu0 0.0
    %1449 = vmatpush.msra.mxu0 0.0
    %1450 = vmatpush.msra.mxu0 0.0
    %1451 = vmatpush.msra.mxu0 0.0
    %1452 = vmatpush.msra.mxu0 0.0
    %1453 = vmatpush.msra.mxu0 0.0
    %1454 = vmatpush.msra.mxu0 0.0
    %1455 = vmatpush.msra.mxu0 0.0
    %1456 = vmatpush.msra.mxu0 0.0
    %1457 = vmatpush.msra.mxu0 0.0
    %1458 = vmatpush.msra.mxu0 0.0
    %1459 = vmatpush.msra.mxu0 0.0
    %1460 = vmatpush.msra.mxu0 0.0
    %1461 = vmatpush.msra.mxu0 %v1311
    %1462 = vmatmul.f32.gmra.mxu0 %v1424
    %v1463 = vpop.f32.mrf.mxu0
    %v1464 = vadd.f32 0.0, %v1463
    %1465 = vdwg.mxu0
    %1466 = vmatpush.msra.mxu0 0.0
    %1467 = vmatpush.msra.mxu0 0.0
    %1468 = vmatpush.msra.mxu0 0.0
    %1469 = vmatpush.msra.mxu0 0.0
    %1470 = vmatpush.msra.mxu0 0.0
    %1471 = vmatpush.msra.mxu0 0.0
    %1472 = vmatpush.msra.mxu0 0.0
    %1473 = vmatpush.msra.mxu0 0.0
    %1474 = vmatpush.msra.mxu0 0.0
    %1475 = vmatpush.msra.mxu0 0.0
    %1476 = vmatpush.msra.mxu0 0.0
    %1477 = vmatpush.msra.mxu0 0.0
    %1478 = vmatpush.msra.mxu0 0.0
    %1479 = vmatpush.msra.mxu0 0.0
    %1480 = vmatpush.msra.mxu0 0.0
    %1481 = vmatpush.msra.mxu0 %v1312
    %1482 = vmatmul.f32.gmra.mxu0 %v1424
    %v1483 = vpop.f32.mrf.mxu0
    %v1484 = vadd.f32 0.0, %v1483
    %1485 = vdwg.mxu0
    %1486 = vmatpush.msra.mxu0 0.0
    %1487 = vmatpush.msra.mxu0 0.0
    %1488 = vmatpush.msra.mxu0 0.0
    %1489 = vmatpush.msra.mxu0 0.0
    %1490 = vmatpush.msra.mxu0 0.0
    %1491 = vmatpush.msra.mxu0 0.0
    %1492 = vmatpush.msra.mxu0 0.0
    %1493 = vmatpush.msra.mxu0 0.0
    %1494 = vmatpush.msra.mxu0 0.0
    %1495 = vmatpush.msra.mxu0 0.0
    %1496 = vmatpush.msra.mxu0 0.0
    %1497 = vmatpush.msra.mxu0 0.0
    %1498 = vmatpush.msra.mxu0 0.0
    %1499 = vmatpush.msra.mxu0 0.0
    %1500 = vmatpush.msra.mxu0 0.0
    %1501 = vmatpush.msra.mxu0 %v1313
    %1502 = vmatmul.f32.gmra.mxu0 %v1424
    %v1503 = vpop.f32.mrf.mxu0
    %v1504 = vadd.f32 0.0, %v1503
    %1505 = vdwg.mxu0
    %v1506 = vperm.slane %v1444, 0
    %v1507 = vperm.slane %v1464, 0
    %v1508 = vperm.slane %v1484, 0
    %v1509 = vperm.slane %v1504, 0
    %v1510 = vmul.f32 %v1238, %v1506
    %v1511 = vmul.f32 %v1239, %v1507
    %v1512 = vmul.f32 %v1240, %v1508
    %v1513 = vmul.f32 %v1241, %v1509
    %v1514 = vperm.slane %v1444, 1
    %v1515 = vperm.slane %v1464, 1
    %v1516 = vperm.slane %v1484, 1
    %v1517 = vperm.slane %v1504, 1
    %v1518 = vadd.f32 %v1510, %v1514
    %v1519 = vadd.f32 %v1511, %v1515
    %v1520 = vadd.f32 %v1512, %v1516
    %v1521 = vadd.f32 %v1513, %v1517
    %v1522 = vld [vmem:[#allocation7] sm:$0xff]
    %v1523 = vld [vmem:[#allocation7 + $0x8] sm:$0xff]
    %v1524 = vld [vmem:[#allocation7 + $0x10] sm:$0xff]
    %v1525 = vld [vmem:[#allocation7 + $0x18] sm:$0xff]
    %v1526 = vld [vmem:[#allocation7 + $0x20] sm:$0xff]
    %v1527 = vld [vmem:[#allocation7 + $0x28] sm:$0xff]
    %v1528 = vld [vmem:[#allocation7 + $0x30] sm:$0xff]
    %v1529 = vld [vmem:[#allocation7 + $0x38] sm:$0xff]
    %v1530 = vld [vmem:[#allocation7 + $0x40] sm:$0xff]
    %v1531 = vld [vmem:[#allocation7 + $0x48] sm:$0xff]
    %v1532 = vld [vmem:[#allocation7 + $0x50] sm:$0xff]
    %v1533 = vld [vmem:[#allocation7 + $0x58] sm:$0xff]
    %v1534 = vld [vmem:[#allocation7 + $0x60] sm:$0xff]
    %v1535 = vld [vmem:[#allocation7 + $0x68] sm:$0xff]
    %v1536 = vld [vmem:[#allocation7 + $0x70] sm:$0xff]
    %v1537 = vld [vmem:[#allocation7 + $0x78] sm:$0xff]
    %v1538 = vld [vmem:[#allocation7 + $0x80] sm:$0xff]
    %v1539 = vld [vmem:[#allocation7 + $0x88] sm:$0xff]
    %v1540 = vld [vmem:[#allocation7 + $0x90] sm:$0xff]
    %v1541 = vld [vmem:[#allocation7 + $0x98] sm:$0xff]
    %v1542 = vld [vmem:[#allocation7 + $0xa0] sm:$0xff]
    %v1543 = vld [vmem:[#allocation7 + $0xa8] sm:$0xff]
    %v1544 = vld [vmem:[#allocation7 + $0xb0] sm:$0xff]
    %v1545 = vld [vmem:[#allocation7 + $0xb8] sm:$0xff]
    %v1546 = vld [vmem:[#allocation7 + $0xc0] sm:$0xff]
    %v1547 = vld [vmem:[#allocation7 + $0xc8] sm:$0xff]
    %v1548 = vld [vmem:[#allocation7 + $0xd0] sm:$0xff]
    %v1549 = vld [vmem:[#allocation7 + $0xd8] sm:$0xff]
    %v1550 = vld [vmem:[#allocation7 + $0xe0] sm:$0xff]
    %v1551 = vld [vmem:[#allocation7 + $0xe8] sm:$0xff]
    %v1552 = vld [vmem:[#allocation7 + $0xf0] sm:$0xff]
    %v1553 = vld [vmem:[#allocation7 + $0xf8] sm:$0xff]
    %v1554 = vld [vmem:[#allocation7 + $0x100] sm:$0xff]
    %v1555 = vld [vmem:[#allocation7 + $0x108] sm:$0xff]
    %v1556 = vld [vmem:[#allocation7 + $0x110] sm:$0xff]
    %v1557 = vld [vmem:[#allocation7 + $0x118] sm:$0xff]
    %v1558 = vld [vmem:[#allocation7 + $0x120] sm:$0xff]
    %v1559 = vld [vmem:[#allocation7 + $0x128] sm:$0xff]
    %v1560 = vld [vmem:[#allocation7 + $0x130] sm:$0xff]
    %v1561 = vld [vmem:[#allocation7 + $0x138] sm:$0xff]
    %v1562 = vld [vmem:[#allocation7 + $0x140] sm:$0xff]
    %v1563 = vld [vmem:[#allocation7 + $0x148] sm:$0xff]
    %v1564 = vld [vmem:[#allocation7 + $0x150] sm:$0xff]
    %v1565 = vld [vmem:[#allocation7 + $0x158] sm:$0xff]
    %v1566 = vld [vmem:[#allocation7 + $0x160] sm:$0xff]
    %v1567 = vld [vmem:[#allocation7 + $0x168] sm:$0xff]
    %v1568 = vld [vmem:[#allocation7 + $0x170] sm:$0xff]
    %v1569 = vld [vmem:[#allocation7 + $0x178] sm:$0xff]
    %v1570 = vld [vmem:[#allocation7 + $0x180] sm:$0xff]
    %v1571 = vld [vmem:[#allocation7 + $0x188] sm:$0xff]
    %v1572 = vld [vmem:[#allocation7 + $0x190] sm:$0xff]
    %v1573 = vld [vmem:[#allocation7 + $0x198] sm:$0xff]
    %v1574 = vld [vmem:[#allocation7 + $0x1a0] sm:$0xff]
    %v1575 = vld [vmem:[#allocation7 + $0x1a8] sm:$0xff]
    %v1576 = vld [vmem:[#allocation7 + $0x1b0] sm:$0xff]
    %v1577 = vld [vmem:[#allocation7 + $0x1b8] sm:$0xff]
    %v1578 = vld [vmem:[#allocation7 + $0x1c0] sm:$0xff]
    %v1579 = vld [vmem:[#allocation7 + $0x1c8] sm:$0xff]
    %v1580 = vld [vmem:[#allocation7 + $0x1d0] sm:$0xff]
    %v1581 = vld [vmem:[#allocation7 + $0x1d8] sm:$0xff]
    %v1582 = vld [vmem:[#allocation7 + $0x1e0] sm:$0xff]
    %v1583 = vld [vmem:[#allocation7 + $0x1e8] sm:$0xff]
    %v1584 = vld [vmem:[#allocation7 + $0x1f0] sm:$0xff]
    %v1585 = vld [vmem:[#allocation7 + $0x1f8] sm:$0xff]
    %v1586 = vunpack.c.l.bf16 %v1522
    %v1587 = vunpack.c.h.bf16 %v1522
    %v1588 = vunpack.c.l.bf16 %v1523
    %v1589 = vunpack.c.h.bf16 %v1523
    %v1590 = vunpack.c.l.bf16 %v1524
    %v1591 = vunpack.c.h.bf16 %v1524
    %v1592 = vunpack.c.l.bf16 %v1525
    %v1593 = vunpack.c.h.bf16 %v1525
    %v1594 = vunpack.c.l.bf16 %v1526
    %v1595 = vunpack.c.h.bf16 %v1526
    %v1596 = vunpack.c.l.bf16 %v1527
    %v1597 = vunpack.c.h.bf16 %v1527
    %v1598 = vunpack.c.l.bf16 %v1528
    %v1599 = vunpack.c.h.bf16 %v1528
    %v1600 = vunpack.c.l.bf16 %v1529
    %v1601 = vunpack.c.h.bf16 %v1529
    %v1602 = vunpack.c.l.bf16 %v1530
    %v1603 = vunpack.c.h.bf16 %v1530
    %v1604 = vunpack.c.l.bf16 %v1531
    %v1605 = vunpack.c.h.bf16 %v1531
    %v1606 = vunpack.c.l.bf16 %v1532
    %v1607 = vunpack.c.h.bf16 %v1532
    %v1608 = vunpack.c.l.bf16 %v1533
    %v1609 = vunpack.c.h.bf16 %v1533
    %v1610 = vunpack.c.l.bf16 %v1534
    %v1611 = vunpack.c.h.bf16 %v1534
    %v1612 = vunpack.c.l.bf16 %v1535
    %v1613 = vunpack.c.h.bf16 %v1535
    %v1614 = vunpack.c.l.bf16 %v1536
    %v1615 = vunpack.c.h.bf16 %v1536
    %v1616 = vunpack.c.l.bf16 %v1537
    %v1617 = vunpack.c.h.bf16 %v1537
    %v1618 = vunpack.c.l.bf16 %v1538
    %v1619 = vunpack.c.h.bf16 %v1538
    %v1620 = vunpack.c.l.bf16 %v1539
    %v1621 = vunpack.c.h.bf16 %v1539
    %v1622 = vunpack.c.l.bf16 %v1540
    %v1623 = vunpack.c.h.bf16 %v1540
    %v1624 = vunpack.c.l.bf16 %v1541
    %v1625 = vunpack.c.h.bf16 %v1541
    %v1626 = vunpack.c.l.bf16 %v1542
    %v1627 = vunpack.c.h.bf16 %v1542
    %v1628 = vunpack.c.l.bf16 %v1543
    %v1629 = vunpack.c.h.bf16 %v1543
    %v1630 = vunpack.c.l.bf16 %v1544
    %v1631 = vunpack.c.h.bf16 %v1544
    %v1632 = vunpack.c.l.bf16 %v1545
    %v1633 = vunpack.c.h.bf16 %v1545
    %v1634 = vunpack.c.l.bf16 %v1546
    %v1635 = vunpack.c.h.bf16 %v1546
    %v1636 = vunpack.c.l.bf16 %v1547
    %v1637 = vunpack.c.h.bf16 %v1547
    %v1638 = vunpack.c.l.bf16 %v1548
    %v1639 = vunpack.c.h.bf16 %v1548
    %v1640 = vunpack.c.l.bf16 %v1549
    %v1641 = vunpack.c.h.bf16 %v1549
    %v1642 = vunpack.c.l.bf16 %v1550
    %v1643 = vunpack.c.h.bf16 %v1550
    %v1644 = vunpack.c.l.bf16 %v1551
    %v1645 = vunpack.c.h.bf16 %v1551
    %v1646 = vunpack.c.l.bf16 %v1552
    %v1647 = vunpack.c.h.bf16 %v1552
    %v1648 = vunpack.c.l.bf16 %v1553
    %v1649 = vunpack.c.h.bf16 %v1553
    %v1650 = vunpack.c.l.bf16 %v1554
    %v1651 = vunpack.c.h.bf16 %v1554
    %v1652 = vunpack.c.l.bf16 %v1555
    %v1653 = vunpack.c.h.bf16 %v1555
    %v1654 = vunpack.c.l.bf16 %v1556
    %v1655 = vunpack.c.h.bf16 %v1556
    %v1656 = vunpack.c.l.bf16 %v1557
    %v1657 = vunpack.c.h.bf16 %v1557
    %v1658 = vunpack.c.l.bf16 %v1558
    %v1659 = vunpack.c.h.bf16 %v1558
    %v1660 = vunpack.c.l.bf16 %v1559
    %v1661 = vunpack.c.h.bf16 %v1559
    %v1662 = vunpack.c.l.bf16 %v1560
    %v1663 = vunpack.c.h.bf16 %v1560
    %v1664 = vunpack.c.l.bf16 %v1561
    %v1665 = vunpack.c.h.bf16 %v1561
    %v1666 = vunpack.c.l.bf16 %v1562
    %v1667 = vunpack.c.h.bf16 %v1562
    %v1668 = vunpack.c.l.bf16 %v1563
    %v1669 = vunpack.c.h.bf16 %v1563
    %v1670 = vunpack.c.l.bf16 %v1564
    %v1671 = vunpack.c.h.bf16 %v1564
    %v1672 = vunpack.c.l.bf16 %v1565
    %v1673 = vunpack.c.h.bf16 %v1565
    %v1674 = vunpack.c.l.bf16 %v1566
    %v1675 = vunpack.c.h.bf16 %v1566
    %v1676 = vunpack.c.l.bf16 %v1567
    %v1677 = vunpack.c.h.bf16 %v1567
    %v1678 = vunpack.c.l.bf16 %v1568
    %v1679 = vunpack.c.h.bf16 %v1568
    %v1680 = vunpack.c.l.bf16 %v1569
    %v1681 = vunpack.c.h.bf16 %v1569
    %v1682 = vunpack.c.l.bf16 %v1570
    %v1683 = vunpack.c.h.bf16 %v1570
    %v1684 = vunpack.c.l.bf16 %v1571
    %v1685 = vunpack.c.h.bf16 %v1571
    %v1686 = vunpack.c.l.bf16 %v1572
    %v1687 = vunpack.c.h.bf16 %v1572
    %v1688 = vunpack.c.l.bf16 %v1573
    %v1689 = vunpack.c.h.bf16 %v1573
    %v1690 = vunpack.c.l.bf16 %v1574
    %v1691 = vunpack.c.h.bf16 %v1574
    %v1692 = vunpack.c.l.bf16 %v1575
    %v1693 = vunpack.c.h.bf16 %v1575
    %v1694 = vunpack.c.l.bf16 %v1576
    %v1695 = vunpack.c.h.bf16 %v1576
    %v1696 = vunpack.c.l.bf16 %v1577
    %v1697 = vunpack.c.h.bf16 %v1577
    %v1698 = vunpack.c.l.bf16 %v1578
    %v1699 = vunpack.c.h.bf16 %v1578
    %v1700 = vunpack.c.l.bf16 %v1579
    %v1701 = vunpack.c.h.bf16 %v1579
    %v1702 = vunpack.c.l.bf16 %v1580
    %v1703 = vunpack.c.h.bf16 %v1580
    %v1704 = vunpack.c.l.bf16 %v1581
    %v1705 = vunpack.c.h.bf16 %v1581
    %v1706 = vunpack.c.l.bf16 %v1582
    %v1707 = vunpack.c.h.bf16 %v1582
    %v1708 = vunpack.c.l.bf16 %v1583
    %v1709 = vunpack.c.h.bf16 %v1583
    %v1710 = vunpack.c.l.bf16 %v1584
    %v1711 = vunpack.c.h.bf16 %v1584
    %v1712 = vunpack.c.l.bf16 %v1585
    %v1713 = vunpack.c.h.bf16 %v1585
    %v1714 = vld [vmem:[%s6] sm:$0x3]
    %v1716 = vperm.slane %v1714, 0
    %v1717 = vperm.slane %v1714, 1
    %1720 = vmatpush.msra.mxu0 %v1616
    %1721 = vmatpush.msra.mxu0 %v1614
    %1722 = vmatpush.msra.mxu0 %v1612
    %1723 = vmatpush.msra.mxu0 %v1610
    %1724 = vmatpush.msra.mxu0 %v1608
    %1725 = vmatpush.msra.mxu0 %v1606
    %1726 = vmatpush.msra.mxu0 %v1604
    %1727 = vmatpush.msra.mxu0 %v1602
    %1728 = vmatpush.msra.mxu0 %v1600
    %1729 = vmatpush.msra.mxu0 %v1598
    %1730 = vmatpush.msra.mxu0 %v1596
    %1731 = vmatpush.msra.mxu0 %v1594
    %1732 = vmatpush.msra.mxu0 %v1592
    %1733 = vmatpush.msra.mxu0 %v1590
    %1734 = vmatpush.msra.mxu0 %v1588
    %1735 = vmatpush.msra.mxu0 %v1586
    %1736 = vmatmul.f32.gmra.mxu0 %v1518
    %v1737 = vpop.f32.mrf.mxu0
    %v1738 = vadd.f32 %v1716, %v1737
    %1739 = vdwg.mxu0
    %1740 = vmatpush.msra.mxu0 %v1648
    %1741 = vmatpush.msra.mxu0 %v1646
    %1742 = vmatpush.msra.mxu0 %v1644
    %1743 = vmatpush.msra.mxu0 %v1642
    %1744 = vmatpush.msra.mxu0 %v1640
    %1745 = vmatpush.msra.mxu0 %v1638
    %1746 = vmatpush.msra.mxu0 %v1636
    %1747 = vmatpush.msra.mxu0 %v1634
    %1748 = vmatpush.msra.mxu0 %v1632
    %1749 = vmatpush.msra.mxu0 %v1630
    %1750 = vmatpush.msra.mxu0 %v1628
    %1751 = vmatpush.msra.mxu0 %v1626
    %1752 = vmatpush.msra.mxu0 %v1624
    %1753 = vmatpush.msra.mxu0 %v1622
    %1754 = vmatpush.msra.mxu0 %v1620
    %1755 = vmatpush.msra.mxu0 %v1618
    %1756 = vmatmul.f32.gmra.mxu0 %v1519
    %v1757 = vpop.f32.mrf.mxu0
    %v1758 = vadd.f32 %v1738, %v1757
    %1759 = vdwg.mxu0
    %1760 = vmatpush.msra.mxu0 %v1680
    %1761 = vmatpush.msra.mxu0 %v1678
    %1762 = vmatpush.msra.mxu0 %v1676
    %1763 = vmatpush.msra.mxu0 %v1674
    %1764 = vmatpush.msra.mxu0 %v1672
    %1765 = vmatpush.msra.mxu0 %v1670
    %1766 = vmatpush.msra.mxu0 %v1668
    %1767 = vmatpush.msra.mxu0 %v1666
    %1768 = vmatpush.msra.mxu0 %v1664
    %1769 = vmatpush.msra.mxu0 %v1662
    %1770 = vmatpush.msra.mxu0 %v1660
    %1771 = vmatpush.msra.mxu0 %v1658
    %1772 = vmatpush.msra.mxu0 %v1656
    %1773 = vmatpush.msra.mxu0 %v1654
    %1774 = vmatpush.msra.mxu0 %v1652
    %1775 = vmatpush.msra.mxu0 %v1650
    %1776 = vmatmul.f32.gmra.mxu0 %v1520
    %v1777 = vpop.f32.mrf.mxu0
    %v1778 = vadd.f32 %v1758, %v1777
    %1779 = vdwg.mxu0
    %1780 = vmatpush.msra.mxu0 %v1712
    %1781 = vmatpush.msra.mxu0 %v1710
    %1782 = vmatpush.msra.mxu0 %v1708
    %1783 = vmatpush.msra.mxu0 %v1706
    %1784 = vmatpush.msra.mxu0 %v1704
    %1785 = vmatpush.msra.mxu0 %v1702
    %1786 = vmatpush.msra.mxu0 %v1700
    %1787 = vmatpush.msra.mxu0 %v1698
    %1788 = vmatpush.msra.mxu0 %v1696
    %1789 = vmatpush.msra.mxu0 %v1694
    %1790 = vmatpush.msra.mxu0 %v1692
    %1791 = vmatpush.msra.mxu0 %v1690
    %1792 = vmatpush.msra.mxu0 %v1688
    %1793 = vmatpush.msra.mxu0 %v1686
    %1794 = vmatpush.msra.mxu0 %v1684
    %1795 = vmatpush.msra.mxu0 %v1682
    %1796 = vmatmul.f32.gmra.mxu0 %v1521
    %v1797 = vpop.f32.mrf.mxu0
    %v1798 = vadd.f32 %v1778, %v1797
    %1799 = vdwg.mxu0
    %1800 = vmatpush.msra.mxu0 %v1617
    %1801 = vmatpush.msra.mxu0 %v1615
    %1802 = vmatpush.msra.mxu0 %v1613
    %1803 = vmatpush.msra.mxu0 %v1611
    %1804 = vmatpush.msra.mxu0 %v1609
    %1805 = vmatpush.msra.mxu0 %v1607
    %1806 = vmatpush.msra.mxu0 %v1605
    %1807 = vmatpush.msra.mxu0 %v1603
    %1808 = vmatpush.msra.mxu0 %v1601
    %1809 = vmatpush.msra.mxu0 %v1599
    %1810 = vmatpush.msra.mxu0 %v1597
    %1811 = vmatpush.msra.mxu0 %v1595
    %1812 = vmatpush.msra.mxu0 %v1593
    %1813 = vmatpush.msra.mxu0 %v1591
    %1814 = vmatpush.msra.mxu0 %v1589
    %1815 = vmatpush.msra.mxu0 %v1587
    %1816 = vmatmul.f32.gmra.mxu0 %v1518
    %v1817 = vpop.f32.mrf.mxu0
    %v1818 = vadd.f32 %v1717, %v1817
    %1819 = vdwg.mxu0
    %1820 = vmatpush.msra.mxu0 %v1649
    %1821 = vmatpush.msra.mxu0 %v1647
    %1822 = vmatpush.msra.mxu0 %v1645
    %1823 = vmatpush.msra.mxu0 %v1643
    %1824 = vmatpush.msra.mxu0 %v1641
    %1825 = vmatpush.msra.mxu0 %v1639
    %1826 = vmatpush.msra.mxu0 %v1637
    %1827 = vmatpush.msra.mxu0 %v1635
    %1828 = vmatpush.msra.mxu0 %v1633
    %1829 = vmatpush.msra.mxu0 %v1631
    %1830 = vmatpush.msra.mxu0 %v1629
    %1831 = vmatpush.msra.mxu0 %v1627
    %1832 = vmatpush.msra.mxu0 %v1625
    %1833 = vmatpush.msra.mxu0 %v1623
    %1834 = vmatpush.msra.mxu0 %v1621
    %1835 = vmatpush.msra.mxu0 %v1619
    %1836 = vmatmul.f32.gmra.mxu0 %v1519
    %v1837 = vpop.f32.mrf.mxu0
    %v1838 = vadd.f32 %v1818, %v1837
    %1839 = vdwg.mxu0
    %1840 = vmatpush.msra.mxu0 %v1681
    %1841 = vmatpush.msra.mxu0 %v1679
    %1842 = vmatpush.msra.mxu0 %v1677
    %1843 = vmatpush.msra.mxu0 %v1675
    %1844 = vmatpush.msra.mxu0 %v1673
    %1845 = vmatpush.msra.mxu0 %v1671
    %1846 = vmatpush.msra.mxu0 %v1669
    %1847 = vmatpush.msra.mxu0 %v1667
    %1848 = vmatpush.msra.mxu0 %v1665
    %1849 = vmatpush.msra.mxu0 %v1663
    %1850 = vmatpush.msra.mxu0 %v1661
    %1851 = vmatpush.msra.mxu0 %v1659
    %1852 = vmatpush.msra.mxu0 %v1657
    %1853 = vmatpush.msra.mxu0 %v1655
    %1854 = vmatpush.msra.mxu0 %v1653
    %1855 = vmatpush.msra.mxu0 %v1651
    %1856 = vmatmul.f32.gmra.mxu0 %v1520
    %v1857 = vpop.f32.mrf.mxu0
    %v1858 = vadd.f32 %v1838, %v1857
    %1859 = vdwg.mxu0
    %1860 = vmatpush.msra.mxu0 %v1713
    %1861 = vmatpush.msra.mxu0 %v1711
    %1862 = vmatpush.msra.mxu0 %v1709
    %1863 = vmatpush.msra.mxu0 %v1707
    %1864 = vmatpush.msra.mxu0 %v1705
    %1865 = vmatpush.msra.mxu0 %v1703
    %1866 = vmatpush.msra.mxu0 %v1701
    %1867 = vmatpush.msra.mxu0 %v1699
    %1868 = vmatpush.msra.mxu0 %v1697
    %1869 = vmatpush.msra.mxu0 %v1695
    %1870 = vmatpush.msra.mxu0 %v1693
    %1871 = vmatpush.msra.mxu0 %v1691
    %1872 = vmatpush.msra.mxu0 %v1689
    %1873 = vmatpush.msra.mxu0 %v1687
    %1874 = vmatpush.msra.mxu0 %v1685
    %1875 = vmatpush.msra.mxu0 %v1683
    %1876 = vmatmul.f32.gmra.mxu0 %v1521
    %v1877 = vpop.f32.mrf.mxu0
    %v1878 = vadd.f32 %v1858, %v1877
    %1879 = vdwg.mxu0
    %v1880 = vmul.f32 %v1798, 0.2
    %v1881 = vmul.f32 %v1878, 0.2
    %v1882 = vmax.f32 %v1798, %v1880
    %v1883 = vmax.f32 %v1878, %v1881
    %v1884 = vsel %vm1242, %v1882, 0.0
    %v1885 = vrot.slane %v1884, 4
    %v1886 = vadd.f32 %v1884, %v1885
    %v1887 = vrot.slane %v1886, 2
    %v1888 = vadd.f32 %v1886, %v1887
    %v1889 = vrot.slane %v1888, 1
    %v1890 = vadd.f32 %v1888, %v1889
    %v1891 = vsel %vm1242, %v1883, 0.0
    %v1892 = vrot.slane %v1891, 4
    %v1893 = vadd.f32 %v1891, %v1892
    %v1894 = vrot.slane %v1893, 2
    %v1895 = vadd.f32 %v1893, %v1894
    %v1896 = vrot.slane %v1895, 1
    %v1897 = vadd.f32 %v1895, %v1896
    %v1898 = vmul.f32 %v1882, %v1882
    %v1899 = vmul.f32 %v1883, %v1883
    %v1900 = vsel %vm1242, %v1898, 0.0
    %v1901 = vrot.slane %v1900, 4
    %v1902 = vadd.f32 %v1900, %v1901
    %v1903 = vrot.slane %v1902, 2
    %v1904 = vadd.f32 %v1902, %v1903
    %v1905 = vrot.slane %v1904, 1
    %v1906 = vadd.f32 %v1904, %v1905
    %v1907 = vsel %vm1242, %v1899, 0.0
    %v1908 = vrot.slane %v1907, 4
    %v1909 = vadd.f32 %v1907, %v1908
    %v1910 = vrot.slane %v1909, 2
    %v1911 = vadd.f32 %v1909, %v1910
    %v1912 = vrot.slane %v1911, 1
    %v1913 = vadd.f32 %v1911, %v1912
    %v1914 = vsel %vm1305, %v1890, %v1906
    %v1915 = vsel %vm1305, %v1897, %v1913
    %v1916 = vld [vmem:[#allocation8] sm:$0xff]
    %v1917 = vld [vmem:[#allocation8 + $0x8] sm:$0xff]
    %v1918 = vld [vmem:[#allocation8 + $0x10] sm:$0xff]
    %v1919 = vld [vmem:[#allocation8 + $0x18] sm:$0xff]
    %1920 = vmatpush.xpose.msra.mxu0 0.0
    %1921 = vmatpush.xpose.msra.mxu0 0.0
    %1922 = vmatpush.xpose.msra.mxu0 0.0
    %1923 = vmatpush.xpose.msra.mxu0 0.0
    %1924 = vmatpush.xpose.msra.mxu0 0.0
    %1925 = vmatpush.xpose.msra.mxu0 0.0
    %1926 = vmatpush.xpose.msra.mxu0 0.0
    %1927 = vmatpush.xpose.msra.mxu0 0.0
    %1928 = vmatpush.xpose.msra.mxu0 0.0
    %1929 = vmatpush.xpose.msra.mxu0 0.0
    %1930 = vmatpush.xpose.msra.mxu0 0.0
    %1931 = vmatpush.xpose.msra.mxu0 0.0
    %1932 = vmatpush.xpose.msra.mxu0 0.0
    %1933 = vmatpush.xpose.msra.mxu0 0.0
    %1934 = vmatpush.xpose.msra.mxu0 %v1918
    %1935 = vmatpush.xpose.msra.mxu0 %v1916
    %1936 = vmatmul.f32.gmra.mxu0 %v1914
    %v1937 = vpop.f32.mrf.mxu0
    %v1938 = vadd.f32 0.0, %v1937
    %1939 = vdwg.mxu0
    %1940 = vmatpush.xpose.msra.mxu0 0.0
    %1941 = vmatpush.xpose.msra.mxu0 0.0
    %1942 = vmatpush.xpose.msra.mxu0 0.0
    %1943 = vmatpush.xpose.msra.mxu0 0.0
    %1944 = vmatpush.xpose.msra.mxu0 0.0
    %1945 = vmatpush.xpose.msra.mxu0 0.0
    %1946 = vmatpush.xpose.msra.mxu0 0.0
    %1947 = vmatpush.xpose.msra.mxu0 0.0
    %1948 = vmatpush.xpose.msra.mxu0 0.0
    %1949 = vmatpush.xpose.msra.mxu0 0.0
    %1950 = vmatpush.xpose.msra.mxu0 0.0
    %1951 = vmatpush.xpose.msra.mxu0 0.0
    %1952 = vmatpush.xpose.msra.mxu0 0.0
    %1953 = vmatpush.xpose.msra.mxu0 0.0
    %1954 = vmatpush.xpose.msra.mxu0 %v1919
    %1955 = vmatpush.xpose.msra.mxu0 %v1917
    %1956 = vmatmul.f32.gmra.mxu0 %v1915
    %v1957 = vpop.f32.mrf.mxu0
    %v1958 = vadd.f32 %v1938, %v1957
    %1959 = vdwg.mxu0
    %v1960 = vmul.f32 %v1958, 0.03125
    %v1961 = vmul.f32 %v1960, %v1960
    %v1963 = vrot.slane %v1961, 7
    %v1965 = vsub.f32 %v1960, %v1963
    %v1966 = vadd.f32 %v1965, 1e-05
    %v1967 = vrsqrt.pop %v1966
    %v1968 = vmul.f32 %v1967, %v1966
    %v1969 = vmul.f32 %v1968, %v1967
    %v1970 = vmul.f32 0.5, %v1969
    %v1971 = vsub.f32 1.5, %v1970
    %v1972 = vmul.f32 %v1967, %v1971
    %vm1973 = vweird.f32 %v1966
    %vm1974 = vweird.f32 %v1967
    %vm1975 = vmor %vm1973, %vm1974
    %v1976 = vsel %vm1975, %v1967, %v1972
    %v1977 = vld [vmem:[%s7] sm:$0x1]
    %v1979 = vrot.slane %v1976, 1
    %v1981 = vmul.f32 %v1977, %v1979
    %v1982 = vld [vmem:[%s7 + $0x1] sm:$0x1]
    %v1983 = vmul.f32 %v1960, %v1981
    %v1984 = vsub.f32 %v1982, %v1983
    %v1985 = vperm.slane %v1981, 0
    %v1986 = vperm.slane %v1984, 0
    %v1987 = vsel %vm1305, %v1985, %v1986
    %vm1988 = vcmask 130048
    %v1990 = vsel %vm1988, %v1987, 0
    %1992 = vmatpush.msra.mxu0 0.0
    %1993 = vmatpush.msra.mxu0 0.0
    %1994 = vmatpush.msra.mxu0 0.0
    %1995 = vmatpush.msra.mxu0 0.0
    %1996 = vmatpush.msra.mxu0 0.0
    %1997 = vmatpush.msra.mxu0 0.0
    %1998 = vmatpush.msra.mxu0 0.0
    %1999 = vmatpush.msra.mxu0 0.0
    %2000 = vmatpush.msra.mxu0 0.0
    %2001 = vmatpush.msra.mxu0 0.0
    %2002 = vmatpush.msra.mxu0 0.0
    %2003 = vmatpush.msra.mxu0 0.0
    %2004 = vmatpush.msra.mxu0 0.0
    %2005 = vmatpush.msra.mxu0 0.0
    %2006 = vmatpush.msra.mxu0 %v1918
    %2007 = vmatpush.msra.mxu0 %v1916
    %2008 = vmatmul.f32.gmra.mxu0 %v1990
    %v2009 = vpop.f32.mrf.mxu0
    %v2010 = vadd.f32 0.0, %v2009
    %2011 = vdwg.mxu0
    %2012 = vmatpush.msra.mxu0 0.0
    %2013 = vmatpush.msra.mxu0 0.0
    %2014 = vmatpush.msra.mxu0 0.0
    %2015 = vmatpush.msra.mxu0 0.0
    %2016 = vmatpush.msra.mxu0 0.0
    %2017 = vmatpush.msra.mxu0 0.0
    %2018 = vmatpush.msra.mxu0 0.0
    %2019 = vmatpush.msra.mxu0 0.0
    %2020 = vmatpush.msra.mxu0 0.0
    %2021 = vmatpush.msra.mxu0 0.0
    %2022 = vmatpush.msra.mxu0 0.0
    %2023 = vmatpush.msra.mxu0 0.0
    %2024 = vmatpush.msra.mxu0 0.0
    %2025 = vmatpush.msra.mxu0 0.0
    %2026 = vmatpush.msra.mxu0 %v1919
    %2027 = vmatpush.msra.mxu0 %v1917
    %2028 = vmatmul.f32.gmra.mxu0 %v1990
    %v2029 = vpop.f32.mrf.mxu0
    %v2030 = vadd.f32 0.0, %v2029
    %2031 = vdwg.mxu0
    %v2032 = vperm.slane %v2010, 0
    %v2033 = vperm.slane %v2030, 0
    %v2034 = vmul.f32 %v1882, %v2032
    %v2035 = vmul.f32 %v1883, %v2033
    %v2036 = vperm.slane %v2010, 1
    %v2037 = vperm.slane %v2030, 1
    %v2038 = vadd.f32 %v2034, %v2036
    %v2039 = vadd.f32 %v2035, %v2037
    %v2040 = vld [vmem:[#allocation10] sm:$0xf]
    %v2041 = vld [vmem:[#allocation10 + $0x4] sm:$0xf]
    %v2042 = vld [vmem:[#allocation10 + $0x8] sm:$0xf]
    %v2043 = vld [vmem:[#allocation10 + $0xc] sm:$0xf]
    %v2044 = vld [vmem:[#allocation10 + $0x10] sm:$0xf]
    %v2045 = vld [vmem:[#allocation10 + $0x14] sm:$0xf]
    %v2046 = vld [vmem:[#allocation10 + $0x18] sm:$0xf]
    %v2047 = vld [vmem:[#allocation10 + $0x1c] sm:$0xf]
    %v2048 = vld [vmem:[#allocation10 + $0x20] sm:$0xf]
    %v2049 = vld [vmem:[#allocation10 + $0x24] sm:$0xf]
    %v2050 = vld [vmem:[#allocation10 + $0x28] sm:$0xf]
    %v2051 = vld [vmem:[#allocation10 + $0x2c] sm:$0xf]
    %v2052 = vld [vmem:[#allocation10 + $0x30] sm:$0xf]
    %v2053 = vld [vmem:[#allocation10 + $0x34] sm:$0xf]
    %v2054 = vld [vmem:[#allocation10 + $0x38] sm:$0xf]
    %v2055 = vld [vmem:[#allocation10 + $0x3c] sm:$0xf]
    %v2056 = vld [vmem:[#allocation10 + $0x40] sm:$0xf]
    %v2057 = vld [vmem:[#allocation10 + $0x44] sm:$0xf]
    %v2058 = vld [vmem:[#allocation10 + $0x48] sm:$0xf]
    %v2059 = vld [vmem:[#allocation10 + $0x4c] sm:$0xf]
    %v2060 = vld [vmem:[#allocation10 + $0x50] sm:$0xf]
    %v2061 = vld [vmem:[#allocation10 + $0x54] sm:$0xf]
    %v2062 = vld [vmem:[#allocation10 + $0x58] sm:$0xf]
    %v2063 = vld [vmem:[#allocation10 + $0x5c] sm:$0xf]
    %v2064 = vld [vmem:[#allocation10 + $0x60] sm:$0xf]
    %v2065 = vld [vmem:[#allocation10 + $0x64] sm:$0xf]
    %v2066 = vld [vmem:[#allocation10 + $0x68] sm:$0xf]
    %v2067 = vld [vmem:[#allocation10 + $0x6c] sm:$0xf]
    %v2068 = vld [vmem:[#allocation10 + $0x70] sm:$0xf]
    %v2069 = vld [vmem:[#allocation10 + $0x74] sm:$0xf]
    %v2070 = vld [vmem:[#allocation10 + $0x78] sm:$0xf]
    %v2071 = vld [vmem:[#allocation10 + $0x7c] sm:$0xf]
    %v2072 = vunpack.c.l.bf16 %v2040
    %v2073 = vunpack.c.l.bf16 %v2041
    %v2074 = vunpack.c.l.bf16 %v2042
    %v2075 = vunpack.c.l.bf16 %v2043
    %v2076 = vunpack.c.l.bf16 %v2044
    %v2077 = vunpack.c.l.bf16 %v2045
    %v2078 = vunpack.c.l.bf16 %v2046
    %v2079 = vunpack.c.l.bf16 %v2047
    %v2080 = vunpack.c.l.bf16 %v2048
    %v2081 = vunpack.c.l.bf16 %v2049
    %v2082 = vunpack.c.l.bf16 %v2050
    %v2083 = vunpack.c.l.bf16 %v2051
    %v2084 = vunpack.c.l.bf16 %v2052
    %v2085 = vunpack.c.l.bf16 %v2053
    %v2086 = vunpack.c.l.bf16 %v2054
    %v2087 = vunpack.c.l.bf16 %v2055
    %v2088 = vunpack.c.l.bf16 %v2056
    %v2089 = vunpack.c.l.bf16 %v2057
    %v2090 = vunpack.c.l.bf16 %v2058
    %v2091 = vunpack.c.l.bf16 %v2059
    %v2092 = vunpack.c.l.bf16 %v2060
    %v2093 = vunpack.c.l.bf16 %v2061
    %v2094 = vunpack.c.l.bf16 %v2062
    %v2095 = vunpack.c.l.bf16 %v2063
    %v2096 = vunpack.c.l.bf16 %v2064
    %v2097 = vunpack.c.l.bf16 %v2065
    %v2098 = vunpack.c.l.bf16 %v2066
    %v2099 = vunpack.c.l.bf16 %v2067
    %v2100 = vunpack.c.l.bf16 %v2068
    %v2101 = vunpack.c.l.bf16 %v2069
    %v2102 = vunpack.c.l.bf16 %v2070
    %v2103 = vunpack.c.l.bf16 %v2071
    %v2104 = vld [vmem:[%s10] sm:$0x1]
    %v2106 = vperm.slane %v2104, 0
    %2108 = vmatpush.msra.mxu0 %v2087
    %2109 = vmatpush.msra.mxu0 %v2086
    %2110 = vmatpush.msra.mxu0 %v2085
    %2111 = vmatpush.msra.mxu0 %v2084
    %2112 = vmatpush.msra.mxu0 %v2083
    %2113 = vmatpush.msra.mxu0 %v2082
    %2114 = vmatpush.msra.mxu0 %v2081
    %2115 = vmatpush.msra.mxu0 %v2080
    %2116 = vmatpush.msra.mxu0 %v2079
    %2117 = vmatpush.msra.mxu0 %v2078
    %2118 = vmatpush.msra.mxu0 %v2077
    %2119 = vmatpush.msra.mxu0 %v2076
    %2120 = vmatpush.msra.mxu0 %v2075
    %2121 = vmatpush.msra.mxu0 %v2074
    %2122 = vmatpush.msra.mxu0 %v2073
    %2123 = vmatpush.msra.mxu0 %v2072
    %2124 = vmatmul.f32.gmra.mxu0 %v2038
    %v2125 = vpop.f32.mrf.mxu0
    %v2126 = vadd.f32 %v2106, %v2125
    %2127 = vdwg.mxu0
    %2128 = vmatpush.msra.mxu0 %v2103
    %2129 = vmatpush.msra.mxu0 %v2102
    %2130 = vmatpush.msra.mxu0 %v2101
    %2131 = vmatpush.msra.mxu0 %v2100
    %2132 = vmatpush.msra.mxu0 %v2099
    %2133 = vmatpush.msra.mxu0 %v2098
    %2134 = vmatpush.msra.mxu0 %v2097
    %2135 = vmatpush.msra.mxu0 %v2096
    %2136 = vmatpush.msra.mxu0 %v2095
    %2137 = vmatpush.msra.mxu0 %v2094
    %2138 = vmatpush.msra.mxu0 %v2093
    %2139 = vmatpush.msra.mxu0 %v2092
    %2140 = vmatpush.msra.mxu0 %v2091
    %2141 = vmatpush.msra.mxu0 %v2090
    %2142 = vmatpush.msra.mxu0 %v2089
    %2143 = vmatpush.msra.mxu0 %v2088
    %2144 = vmatmul.f32.gmra.mxu0 %v2039
    %v2145 = vpop.f32.mrf.mxu0
    %v2146 = vadd.f32 %v2126, %v2145
    %2147 = vdwg.mxu0
    %v2148 = vmul.f32 %v2146, 0.2
    %v2149 = vmax.f32 %v2146, %v2148
    %v2150 = vsel %vm1242, %v2149, 0.0
    %v2151 = vrot.slane %v2150, 4
    %v2152 = vadd.f32 %v2150, %v2151
    %v2153 = vrot.slane %v2152, 2
    %v2154 = vadd.f32 %v2152, %v2153
    %v2155 = vrot.slane %v2154, 1
    %v2156 = vadd.f32 %v2154, %v2155
    %v2157 = vmul.f32 %v2149, %v2149
    %v2158 = vsel %vm1242, %v2157, 0.0
    %v2159 = vrot.slane %v2158, 4
    %v2160 = vadd.f32 %v2158, %v2159
    %v2161 = vrot.slane %v2160, 2
    %v2162 = vadd.f32 %v2160, %v2161
    %v2163 = vrot.slane %v2162, 1
    %v2164 = vadd.f32 %v2162, %v2163
    %v2165 = vsel %vm1305, %v2156, %v2164
    %v2166 = vld [vmem:[%s12] sm:$0xff]
    %v2167 = vld [vmem:[%s12 + $0x8] sm:$0xff]
    %v2168 = vld [vmem:[%s12 + $0x10] sm:$0xff]
    %v2169 = vld [vmem:[%s12 + $0x18] sm:$0xff]
    %2170 = vmatpush.xpose.msra.mxu0 0.0
    %2171 = vmatpush.xpose.msra.mxu0 0.0
    %2172 = vmatpush.xpose.msra.mxu0 0.0
    %2173 = vmatpush.xpose.msra.mxu0 0.0
    %2174 = vmatpush.xpose.msra.mxu0 0.0
    %2175 = vmatpush.xpose.msra.mxu0 0.0
    %2176 = vmatpush.xpose.msra.mxu0 0.0
    %2177 = vmatpush.xpose.msra.mxu0 0.0
    %2178 = vmatpush.xpose.msra.mxu0 0.0
    %2179 = vmatpush.xpose.msra.mxu0 0.0
    %2180 = vmatpush.xpose.msra.mxu0 0.0
    %2181 = vmatpush.xpose.msra.mxu0 0.0
    %2182 = vmatpush.xpose.msra.mxu0 %v2169
    %2183 = vmatpush.xpose.msra.mxu0 %v2168
    %2184 = vmatpush.xpose.msra.mxu0 %v2167
    %2185 = vmatpush.xpose.msra.mxu0 %v2166
    %2186 = vmatmul.f32.gmra.mxu0 %v2165
    %v2187 = vpop.f32.mrf.mxu0
    %v2188 = vadd.f32 0.0, %v2187
    %2189 = vdwg.mxu0
    %v2190 = vmul.f32 %v2188, 0.125
    %v2191 = vmul.f32 %v2190, %v2190
    %v2193 = vrot.slane %v2191, 7
    %v2195 = vsub.f32 %v2190, %v2193
    %v2196 = vadd.f32 %v2195, 1e-05
    %v2197 = vrsqrt.pop %v2196
    %v2198 = vmul.f32 %v2197, %v2196
    %v2199 = vmul.f32 %v2198, %v2197
    %v2200 = vmul.f32 0.5, %v2199
    %v2201 = vsub.f32 1.5, %v2200
    %v2202 = vmul.f32 %v2197, %v2201
    %vm2203 = vweird.f32 %v2196
    %vm2204 = vweird.f32 %v2197
    %vm2205 = vmor %vm2203, %vm2204
    %v2206 = vsel %vm2205, %v2197, %v2202
    %v2207 = vld [vmem:[%s11] sm:$0x1]
    %v2209 = vrot.slane %v2206, 1
    %v2211 = vmul.f32 %v2207, %v2209
    %v2212 = vld [vmem:[%s11 + $0x1] sm:$0x1]
    %v2213 = vmul.f32 %v2190, %v2211
    %v2214 = vsub.f32 %v2212, %v2213
    %v2215 = vperm.slane %v2211, 0
    %v2216 = vperm.slane %v2214, 0
    %v2217 = vsel %vm1305, %v2215, %v2216
    %vm2218 = vcmask 261120
    %v2220 = vsel %vm2218, %v2217, 0
    %2222 = vmatpush.msra.mxu0 0.0
    %2223 = vmatpush.msra.mxu0 0.0
    %2224 = vmatpush.msra.mxu0 0.0
    %2225 = vmatpush.msra.mxu0 0.0
    %2226 = vmatpush.msra.mxu0 0.0
    %2227 = vmatpush.msra.mxu0 0.0
    %2228 = vmatpush.msra.mxu0 0.0
    %2229 = vmatpush.msra.mxu0 0.0
    %2230 = vmatpush.msra.mxu0 0.0
    %2231 = vmatpush.msra.mxu0 0.0
    %2232 = vmatpush.msra.mxu0 0.0
    %2233 = vmatpush.msra.mxu0 0.0
    %2234 = vmatpush.msra.mxu0 %v2169
    %2235 = vmatpush.msra.mxu0 %v2168
    %2236 = vmatpush.msra.mxu0 %v2167
    %2237 = vmatpush.msra.mxu0 %v2166
    %2238 = vmatmul.f32.gmra.mxu0 %v2220
    %v2239 = vpop.f32.mrf.mxu0
    %v2240 = vadd.f32 0.0, %v2239
    %2241 = vdwg.mxu0
    %v2242 = vperm.slane %v2240, 0
    %v2243 = vmul.f32 %v2149, %v2242
    %v2244 = vperm.slane %v2240, 1
    %v2245 = vadd.f32 %v2243, %v2244
    %v2246 = vld [vmem:[#allocation11] sm:$0xf]
    %v2247 = vld [vmem:[#allocation11 + $0x4] sm:$0xf]
    %v2248 = vld [vmem:[#allocation11 + $0x8] sm:$0xf]
    %v2249 = vld [vmem:[#allocation11 + $0xc] sm:$0xf]
    %v2250 = vld [vmem:[#allocation11 + $0x10] sm:$0xf]
    %v2251 = vld [vmem:[#allocation11 + $0x14] sm:$0xf]
    %v2252 = vld [vmem:[#allocation11 + $0x18] sm:$0xf]
    %v2253 = vld [vmem:[#allocation11 + $0x1c] sm:$0xf]
    %v2254 = vld [vmem:[#allocation11 + $0x20] sm:$0xf]
    %v2255 = vld [vmem:[#allocation11 + $0x24] sm:$0xf]
    %v2256 = vld [vmem:[#allocation11 + $0x28] sm:$0xf]
    %v2257 = vld [vmem:[#allocation11 + $0x2c] sm:$0xf]
    %v2258 = vld [vmem:[#allocation11 + $0x30] sm:$0xf]
    %v2259 = vld [vmem:[#allocation11 + $0x34] sm:$0xf]
    %v2260 = vld [vmem:[#allocation11 + $0x38] sm:$0xf]
    %v2261 = vld [vmem:[#allocation11 + $0x3c] sm:$0xf]
    %v2262 = vunpack.c.l.bf16 %v2246
    %v2263 = vunpack.c.l.bf16 %v2247
    %v2264 = vunpack.c.l.bf16 %v2248
    %v2265 = vunpack.c.l.bf16 %v2249
    %v2266 = vunpack.c.l.bf16 %v2250
    %v2267 = vunpack.c.l.bf16 %v2251
    %v2268 = vunpack.c.l.bf16 %v2252
    %v2269 = vunpack.c.l.bf16 %v2253
    %v2270 = vunpack.c.l.bf16 %v2254
    %v2271 = vunpack.c.l.bf16 %v2255
    %v2272 = vunpack.c.l.bf16 %v2256
    %v2273 = vunpack.c.l.bf16 %v2257
    %v2274 = vunpack.c.l.bf16 %v2258
    %v2275 = vunpack.c.l.bf16 %v2259
    %v2276 = vunpack.c.l.bf16 %v2260
    %v2277 = vunpack.c.l.bf16 %v2261
    %v2278 = vld [vmem:[%s14] sm:$0x1]
    %v2280 = vperm.slane %v2278, 0
    %2282 = vmatpush.msra.mxu0 %v2277
    %2283 = vmatpush.msra.mxu0 %v2276
    %2284 = vmatpush.msra.mxu0 %v2275
    %2285 = vmatpush.msra.mxu0 %v2274
    %2286 = vmatpush.msra.mxu0 %v2273
    %2287 = vmatpush.msra.mxu0 %v2272
    %2288 = vmatpush.msra.mxu0 %v2271
    %2289 = vmatpush.msra.mxu0 %v2270
    %2290 = vmatpush.msra.mxu0 %v2269
    %2291 = vmatpush.msra.mxu0 %v2268
    %2292 = vmatpush.msra.mxu0 %v2267
    %2293 = vmatpush.msra.mxu0 %v2266
    %2294 = vmatpush.msra.mxu0 %v2265
    %2295 = vmatpush.msra.mxu0 %v2264
    %2296 = vmatpush.msra.mxu0 %v2263
    %2297 = vmatpush.msra.mxu0 %v2262
    %2298 = vmatmul.f32.gmra.mxu0 %v2245
    %v2299 = vpop.f32.mrf.mxu0
    %v2300 = vadd.f32 %v2280, %v2299
    %2301 = vdwg.mxu0
    %v2302 = vmul.f32 %v2300, 0.2
    %v2303 = vmax.f32 %v2300, %v2302
    %vm2304 = vcmask 517120
    %v2305 = vsel %vm2304, %v2303, 0.0
    %v2306 = vrot.slane %v2305, 4
    %v2307 = vadd.f32 %v2305, %v2306
    %v2308 = vrot.slane %v2307, 2
    %v2309 = vadd.f32 %v2307, %v2308
    %v2310 = vrot.slane %v2309, 1
    %v2311 = vadd.f32 %v2309, %v2310
    %v2312 = vmul.f32 %v2303, %v2303
    %v2313 = vsel %vm2304, %v2312, 0.0
    %v2314 = vrot.slane %v2313, 4
    %v2315 = vadd.f32 %v2313, %v2314
    %v2316 = vrot.slane %v2315, 2
    %v2317 = vadd.f32 %v2315, %v2316
    %v2318 = vrot.slane %v2317, 1
    %v2319 = vadd.f32 %v2317, %v2318
    %v2320 = vsel %vm1305, %v2311, %v2319
    %v2321 = vld [vmem:[%s16] sm:$0xff]
    %v2322 = vld [vmem:[%s16 + $0x8] sm:$0xff]
    %v2323 = vld [vmem:[%s16 + $0x10] sm:$0xff]
    %v2324 = vld [vmem:[%s16 + $0x18] sm:$0xff]
    %v2325 = vld [vmem:[%s16 + $0x20] sm:$0xff]
    %v2326 = vld [vmem:[%s16 + $0x28] sm:$0xff]
    %v2327 = vld [vmem:[%s16 + $0x30] sm:$0xff]
    %v2328 = vld [vmem:[%s16 + $0x38] sm:$0xff]
    %vm2329 = vcmask 523264
    %v2331 = vsel %vm2329, %v2320, 0
    %v2334 = vsel %vm2329, %v2321, 0
    %v2337 = vsel %vm2329, %v2322, 0
    %v2340 = vsel %vm2329, %v2323, 0
    %v2343 = vsel %vm2329, %v2324, 0
    %v2346 = vsel %vm2329, %v2325, 0
    %v2349 = vsel %vm2329, %v2326, 0
    %v2352 = vsel %vm2329, %v2327, 0
    %v2355 = vsel %vm2329, %v2328, 0
    %2357 = vmatpush.xpose.msra.mxu0 0.0
    %2358 = vmatpush.xpose.msra.mxu0 0.0
    %2359 = vmatpush.xpose.msra.mxu0 0.0
    %2360 = vmatpush.xpose.msra.mxu0 0.0
    %2361 = vmatpush.xpose.msra.mxu0 0.0
    %2362 = vmatpush.xpose.msra.mxu0 0.0
    %2363 = vmatpush.xpose.msra.mxu0 0.0
    %2364 = vmatpush.xpose.msra.mxu0 0.0
    %2365 = vmatpush.xpose.msra.mxu0 %v2355
    %2366 = vmatpush.xpose.msra.mxu0 %v2352
    %2367 = vmatpush.xpose.msra.mxu0 %v2349
    %2368 = vmatpush.xpose.msra.mxu0 %v2346
    %2369 = vmatpush.xpose.msra.mxu0 %v2343
    %2370 = vmatpush.xpose.msra.mxu0 %v2340
    %2371 = vmatpush.xpose.msra.mxu0 %v2337
    %2372 = vmatpush.xpose.msra.mxu0 %v2334
    %2373 = vmatmul.f32.gmra.mxu0 %v2331
    %v2374 = vpop.f32.mrf.mxu0
    %v2375 = vadd.f32 0.0, %v2374
    %2376 = vdwg.mxu0
    %v2377 = vmul.f32 %v2375, 0.5
    %v2378 = vmul.f32 %v2377, %v2377
    %v2380 = vrot.slane %v2378, 7
    %v2382 = vsub.f32 %v2377, %v2380
    %v2383 = vadd.f32 %v2382, 1e-05
    %v2384 = vrsqrt.pop %v2383
    %v2385 = vmul.f32 %v2384, %v2383
    %v2386 = vmul.f32 %v2385, %v2384
    %v2387 = vmul.f32 0.5, %v2386
    %v2388 = vsub.f32 1.5, %v2387
    %v2389 = vmul.f32 %v2384, %v2388
    %vm2390 = vweird.f32 %v2383
    %vm2391 = vweird.f32 %v2384
    %vm2392 = vmor %vm2390, %vm2391
    %v2393 = vsel %vm2392, %v2384, %v2389
    %v2394 = vld [vmem:[%s15] sm:$0x1]
    %v2396 = vrot.slane %v2393, 1
    %v2398 = vmul.f32 %v2394, %v2396
    %v2399 = vld [vmem:[%s15 + $0x1] sm:$0x1]
    %v2400 = vmul.f32 %v2377, %v2398
    %v2401 = vsub.f32 %v2399, %v2400
    %v2402 = vperm.slane %v2398, 0
    %v2403 = vperm.slane %v2401, 0
    %v2404 = vsel %vm1305, %v2402, %v2403
    %v2406 = vsel %vm2329, %v2404, 0
    %2408 = vmatpush.msra.mxu0 0.0
    %2409 = vmatpush.msra.mxu0 0.0
    %2410 = vmatpush.msra.mxu0 0.0
    %2411 = vmatpush.msra.mxu0 0.0
    %2412 = vmatpush.msra.mxu0 0.0
    %2413 = vmatpush.msra.mxu0 0.0
    %2414 = vmatpush.msra.mxu0 0.0
    %2415 = vmatpush.msra.mxu0 0.0
    %2416 = vmatpush.msra.mxu0 %v2328
    %2417 = vmatpush.msra.mxu0 %v2327
    %2418 = vmatpush.msra.mxu0 %v2326
    %2419 = vmatpush.msra.mxu0 %v2325
    %2420 = vmatpush.msra.mxu0 %v2324
    %2421 = vmatpush.msra.mxu0 %v2323
    %2422 = vmatpush.msra.mxu0 %v2322
    %2423 = vmatpush.msra.mxu0 %v2321
    %2424 = vmatmul.f32.gmra.mxu0 %v2406
    %v2425 = vpop.f32.mrf.mxu0
    %v2426 = vadd.f32 0.0, %v2425
    %2427 = vdwg.mxu0
    %v2428 = vperm.slane %v2426, 0
    %v2429 = vmul.f32 %v2303, %v2428
    %v2430 = vperm.slane %v2426, 1
    %v2431 = vadd.f32 %v2429, %v2430
    %2432 = vst.msk [vmem:[#allocation13] sm:$0x3] %vm2304, %v2431
    // Predicated region
    $region94: #{_lambda_.1} parent=1 // pred_check
      _
    $region95: #{_lambda_.1} parent=1 // pred_check_branch
      %2434 = sbr.rel (0) target = $region97
    $region96: #{_lambda_.1} parent=1 // pred_region
      %2436 = vsyncadd [#allocation4], 0
      %s2438 = sshll.u32 [#allocation13], 4
      %s2439 = int_to_ptr.vmem [resolvable:$true] %s2438
      %s2440 = sshll.u32 %s17, 4
      %s2441 = int_to_ptr.hbm [resolvable:$true] %s2440
      %2443 = dma.vmem_to_hbm [thread:$0]  %s2439, 32, %s2441, [#allocation4]
    $region97: #{_lambda_.1} parent=1 // pred_fallthru
      _
    // Predicated region
    $region98: #{_lambda_.1} parent=1 // pred_check
      _
    $region99: #{_lambda_.1} parent=1 // pred_check_branch
      %2445 = sbr.rel (0) target = $region101
    $region100: #{_lambda_.1} parent=1 // pred_region
      %2447 = dma.done [#allocation4], 32
    $region101: #{_lambda_.1} parent=1 // pred_fallthru
      _
    %2448 = vsyncpa [#allocation3], 1
    %2449 = vsyncpa [#allocation6], 1
    %2450 = vsyncpa [#allocation9], 1
    %2451 = vsyncpa [#allocation12], 1
    %2452 = vsyncpa [#allocation4], 1

</llo_original>
